<compile_context>
chip_gen: v7x
topology: tpu7x:2x2x1
jax: 0.10.0
libtpu: 0.0.40
codegen_flags: <defaults>
</compile_context>

<pallas_src>
import jax
import jax.numpy as jnp
from jax import lax
from jax.experimental import pallas as pl
from jax.experimental.pallas import tpu as pltpu


def _expand_kernel(xg_ref, t_ref, out_ref):
    """One (batch, row-tile) block per grid step.

    xg_ref : (1, s*s, TM, W)      input rows, grouped by sub-pixel index k = s*s1 + s2
    t_ref  : (s*s, W, s*s*W)      0/1 lane-scatter matrices (constant across the grid)
    out_ref: (1, TM, s*s*W)       lane-dense output rows (free re-view of (2H, 2W) planes)
    """
    ss = t_ref.shape[0]
    acc = jnp.dot(xg_ref[0, 0], t_ref[0],
                  preferred_element_type=jnp.float32,
                  precision=lax.Precision.HIGHEST)
    for k in range(1, ss):
        acc = acc + jnp.dot(xg_ref[0, k], t_ref[k],
                            preferred_element_type=jnp.float32,
                            precision=lax.Precision.HIGHEST)
    out_ref[0] = acc.astype(out_ref.dtype)


def expand_pallas(x, gain=2, row_tile=None):
    """x: (B, C, H, W) NCHW (matches the PyTorch module). Returns (B, C//gain^2, H*gain, W*gain)."""
    B, C, H, W = x.shape
    s = int(gain)
    assert C % (s * s) == 0, "channels must be divisible by gain**2"
    C_out = C // (s * s)
    M = C_out * H                       # independent output "rows" per batch element

    # Row tiling keeps the per-block VMEM footprint bounded at production shapes.
    if row_tile is None:
        row_tile = M
        if M > 512:
            for t in (512, 256, 128, 64, 32, 16, 8):
                if M % t == 0:
                    row_tile = t
                    break
    assert M % row_tile == 0

    # Free view: channel c = k*C_out + co  ->  (k, co*H + h, w)
    xg = x.reshape(B, s * s, M, W)

    # Scatter matrices: T[k, w, j] = 1  iff  j = (k//s)*(s*W) + s*w + (k%s)
    kk = jnp.arange(s * s)[:, None, None]
    ww = jnp.arange(W)[None, :, None]
    jj = jnp.arange(s * s * W)[None, None, :]
    T = (jj == (kk // s) * (s * W) + s * ww + (kk % s)).astype(x.dtype)

    grid = (B, M // row_tile)
    out_flat = pl.pallas_call(
        _expand_kernel,
        out_shape=jax.ShapeDtypeStruct((B, M, s * s * W), x.dtype),
        grid_spec=pltpu.PrefetchScalarGridSpec(
            num_scalar_prefetch=0,
            grid=grid,
            in_specs=[
                pl.BlockSpec((1, s * s, row_tile, W), lambda b, r: (b, 0, r, 0)),
                pl.BlockSpec((s * s, W, s * s * W), lambda b, r: (0, 0, 0)),
            ],
            out_specs=pl.BlockSpec((1, row_tile, s * s * W), lambda b, r: (b, r, 0)),
        ),
        compiler_params=pltpu.CompilerParams(
            dimension_semantics=("parallel", "parallel")),
    )(xg, T)

    # Free row-major re-view back to NCHW depth-to-space layout:
    # (B, C_out*H, s*s*W) == (B, C_out, H, s, s*W) == (B, C_out, H*s, W*s)
    return out_flat.reshape(B, C_out, H * s, W * s)


def expand_reference(x, gain=2):
    """Pure-JAX mirror of the PyTorch forward (view / permute / view)."""
    b, c, h, w = x.shape
    s = gain
    y = x.reshape(b, s, s, c // (s * s), h, w)
    y = jnp.transpose(y, (0, 3, 4, 1, 5, 2))
    return y.reshape(b, c // (s * s), h * s, w * s)


if __name__ == "__main__":
    # Expand(gain=2) on a PyTorch-style NCHW input [2, 4, 16, 16] -> [2, 1, 32, 32]
    N, C, H, W = 2, 4, 16, 16
    key = jax.random.PRNGKey(0)
    x = jax.random.normal(key, (N, C, H, W), jnp.float32)

    out = expand_pallas(x, gain=2)
    out = jax.block_until_ready(out)

    ref = expand_reference(x, gain=2)
    assert out.shape == (N, C // 4, H * 2, W * 2)
    assert jnp.allclose(out, ref, atol=1e-5, rtol=1e-5), \
        f"max abs err {jnp.max(jnp.abs(out - ref))}"
    print("KERNEL_OK")
</pallas_src>

<mosaic_0001>
module attributes {stable_mosaic.version = 11 : i64} {
  func.func @_expand_kernel(%arg0: i32, %arg1: i32, %arg2: memref<1x4x16x16xf32, #tpu.memory_space<vmem>>, %arg3: memref<4x16x64xf32, #tpu.memory_space<vmem>>, %arg4: memref<1x16x64xf32, #tpu.memory_space<vmem>>) attributes {dimension_semantics = [#tpu.dimension_semantics<parallel>, #tpu.dimension_semantics<parallel>], iteration_bounds = array<i64: 2, 1>, scalar_prefetch = 0 : i64, scratch_operands = 0 : i64, tpu.core_type = #tpu.core_type<tc>, window_params = [{transform_indices = @transform_0, window_bounds = array<i64: 1, 4, 16, 16>}, {pipeline_mode = #tpu.pipeline_mode<synchronous>, transform_indices = @transform_1, window_bounds = array<i64: 4, 16, 64>}, {transform_indices = @transform_2, window_bounds = array<i64: 1, 16, 64>}]} {
    %c0 = arith.constant 0 : index
    %c0_0 = arith.constant 0 : index
    %c0_1 = arith.constant 0 : index
    %c0_2 = arith.constant 0 : index
    %0 = vector.load %arg2[%c0, %c0_0, %c0_1, %c0_2] : memref<1x4x16x16xf32, #tpu.memory_space<vmem>>, vector<1x1x16x16xf32>
    %1 = vector.shape_cast %0 : vector<1x1x16x16xf32> to vector<16x16xf32>
    %c0_3 = arith.constant 0 : index
    %c0_4 = arith.constant 0 : index
    %c0_5 = arith.constant 0 : index
    %2 = vector.load %arg3[%c0_3, %c0_4, %c0_5] : memref<4x16x64xf32, #tpu.memory_space<vmem>>, vector<1x16x64xf32>
    %3 = vector.shape_cast %2 : vector<1x16x64xf32> to vector<16x64xf32>
    %cst = arith.constant dense<0.000000e+00> : vector<16x64xf32>
    %4 = tpu.matmul %1, %3, %cst {dimension_numbers = #tpu.dot_dimension_numbers<[1], [0], [0], [1], [0, 0, 1, 1], [], []>, precision = #tpu.contract_precision<fp32>} : vector<16x16xf32>, vector<16x64xf32>, vector<16x64xf32> -> vector<16x64xf32>
    %c0_6 = arith.constant 0 : index
    %c1 = arith.constant 1 : index
    %c0_7 = arith.constant 0 : index
    %c0_8 = arith.constant 0 : index
    %5 = vector.load %arg2[%c0_6, %c1, %c0_7, %c0_8] : memref<1x4x16x16xf32, #tpu.memory_space<vmem>>, vector<1x1x16x16xf32>
    %6 = vector.shape_cast %5 : vector<1x1x16x16xf32> to vector<16x16xf32>
    %c1_9 = arith.constant 1 : index
    %c0_10 = arith.constant 0 : index
    %c0_11 = arith.constant 0 : index
    %7 = vector.load %arg3[%c1_9, %c0_10, %c0_11] : memref<4x16x64xf32, #tpu.memory_space<vmem>>, vector<1x16x64xf32>
    %8 = vector.shape_cast %7 : vector<1x16x64xf32> to vector<16x64xf32>
    %cst_12 = arith.constant dense<0.000000e+00> : vector<16x64xf32>
    %9 = tpu.matmul %6, %8, %cst_12 {dimension_numbers = #tpu.dot_dimension_numbers<[1], [0], [0], [1], [0, 0, 1, 1], [], []>, precision = #tpu.contract_precision<fp32>} : vector<16x16xf32>, vector<16x64xf32>, vector<16x64xf32> -> vector<16x64xf32>
    %10 = arith.addf %4, %9 : vector<16x64xf32>
    %c0_13 = arith.constant 0 : index
    %c2 = arith.constant 2 : index
    %c0_14 = arith.constant 0 : index
    %c0_15 = arith.constant 0 : index
    %11 = vector.load %arg2[%c0_13, %c2, %c0_14, %c0_15] : memref<1x4x16x16xf32, #tpu.memory_space<vmem>>, vector<1x1x16x16xf32>
    %12 = vector.shape_cast %11 : vector<1x1x16x16xf32> to vector<16x16xf32>
    %c2_16 = arith.constant 2 : index
    %c0_17 = arith.constant 0 : index
    %c0_18 = arith.constant 0 : index
    %13 = vector.load %arg3[%c2_16, %c0_17, %c0_18] : memref<4x16x64xf32, #tpu.memory_space<vmem>>, vector<1x16x64xf32>
    %14 = vector.shape_cast %13 : vector<1x16x64xf32> to vector<16x64xf32>
    %cst_19 = arith.constant dense<0.000000e+00> : vector<16x64xf32>
    %15 = tpu.matmul %12, %14, %cst_19 {dimension_numbers = #tpu.dot_dimension_numbers<[1], [0], [0], [1], [0, 0, 1, 1], [], []>, precision = #tpu.contract_precision<fp32>} : vector<16x16xf32>, vector<16x64xf32>, vector<16x64xf32> -> vector<16x64xf32>
    %16 = arith.addf %10, %15 : vector<16x64xf32>
    %c0_20 = arith.constant 0 : index
    %c3 = arith.constant 3 : index
    %c0_21 = arith.constant 0 : index
    %c0_22 = arith.constant 0 : index
    %17 = vector.load %arg2[%c0_20, %c3, %c0_21, %c0_22] : memref<1x4x16x16xf32, #tpu.memory_space<vmem>>, vector<1x1x16x16xf32>
    %18 = vector.shape_cast %17 : vector<1x1x16x16xf32> to vector<16x16xf32>
    %c3_23 = arith.constant 3 : index
    %c0_24 = arith.constant 0 : index
    %c0_25 = arith.constant 0 : index
    %19 = vector.load %arg3[%c3_23, %c0_24, %c0_25] : memref<4x16x64xf32, #tpu.memory_space<vmem>>, vector<1x16x64xf32>
    %20 = vector.shape_cast %19 : vector<1x16x64xf32> to vector<16x64xf32>
    %cst_26 = arith.constant dense<0.000000e+00> : vector<16x64xf32>
    %21 = tpu.matmul %18, %20, %cst_26 {dimension_numbers = #tpu.dot_dimension_numbers<[1], [0], [0], [1], [0, 0, 1, 1], [], []>, precision = #tpu.contract_precision<fp32>} : vector<16x16xf32>, vector<16x64xf32>, vector<16x64xf32> -> vector<16x64xf32>
    %22 = arith.addf %16, %21 : vector<16x64xf32>
    %c0_27 = arith.constant 0 : index
    %c0_28 = arith.constant 0 : index
    %c0_29 = arith.constant 0 : index
    %23 = vector.load %arg4[%c0_27, %c0_28, %c0_29] : memref<1x16x64xf32, #tpu.memory_space<vmem>>, vector<1x16x64xf32>
    %24 = vector.shape_cast %23 : vector<1x16x64xf32> to vector<16x64xf32>
    %25 = vector.shape_cast %22 : vector<16x64xf32> to vector<1x16x64xf32>
    tpu.vector_store %arg4[%c0_27, %c0_28, %c0_29], %25 {strides = array<i32>} : memref<1x16x64xf32, #tpu.memory_space<vmem>>, vector<1x16x64xf32>,
    return
  }
  func.func @transform_0(%arg0: i32, %arg1: i32) -> (i32, i32, i32, i32) {
    %c0_i32 = arith.constant 0 : i32
    %c0_i32_0 = arith.constant 0 : i32
    %c0_i32_1 = arith.constant 0 : i32
    return %arg0, %c0_i32, %arg1, %c0_i32_0 : i32, i32, i32, i32
  }
  func.func @transform_1(%arg0: i32, %arg1: i32) -> (i32, i32, i32) {
    %c0_i32 = arith.constant 0 : i32
    %c0_i32_0 = arith.constant 0 : i32
    %c0_i32_1 = arith.constant 0 : i32
    %c0_i32_2 = arith.constant 0 : i32
    return %c0_i32, %c0_i32_0, %c0_i32_1 : i32, i32, i32
  }
  func.func @transform_2(%arg0: i32, %arg1: i32) -> (i32, i32, i32) {
    %c0_i32 = arith.constant 0 : i32
    %c0_i32_0 = arith.constant 0 : i32
    return %arg0, %arg1, %c0_i32 : i32, i32, i32
  }
}

</mosaic_0001>

<llo_original>
// kernel: tpu_custom_call.1
$region0: #{tpu_custom_call.1}
  #allocation0 [shape = 'u32[]', space=smem, size = 0x4, offset = 0x4, fixed_abs, tag = 'smem constant byte address 0x4 - core index']
  #allocation1 [shape = 'u32[144,128]{1,0:T(1,128)}', space=vmem, size = 0x12000, scoped, tag = 'internal scratch']
  %s0 = inlined_call_operand.hbm [shape: f32[2,4,16,16], index: 0, kind: input, shape index: {}]
  %s1 = inlined_call_operand.hbm [shape: f32[4,16,64], index: 1, kind: input, shape index: {}]
  %s2 = inlined_call_operand.hbm [shape: f32[2,16,64], index: 2, kind: output, shape index: {}]
  %s3 = sld [smem:[#allocation0]]
  $region49: #{tpu_custom_call.1} parent=0
    _
  %s5 = ssub.s32 1, %s3
  %s6 = scalar_select 0, %s5, %s3
  $region1: #{tpu_custom_call.1} parent=0
    #allocation2 [shape = 'u8[65536]{0}', space=vmem, size = 0x10000, scoped, tag = 'input window, operand 0']
    #allocation3 [shape = 's32[2]{0}', space=sflag, size = 0x8, scoped, tag = 'scoped memory for tpu_custom_call.1']
    #allocation4 [shape = 's32[2]{0}', space=sflag, size = 0x8, scoped, tag = 'scoped memory for tpu_custom_call.1']
    #allocation5 [shape = 'u8[32768]{0}', space=vmem, size = 0x8000, scoped, tag = 'input window, operand 1, single buffered']
    #allocation6 [shape = 's32[1]{0}', space=sflag, size = 0x4, scoped, tag = 'scoped memory for tpu_custom_call.1']
    #allocation7 [shape = 'u8[16384]{0}', space=vmem, size = 0x4000, scoped, tag = 'output window, operand 0']
    %7 = vsyncpa [#allocation3], 0
    %s8 = scalar_lea.sflag [#allocation3], 1
    %9 = vsyncpa %s8, 0
    %10 = vsyncpa [#allocation6], 0
    %11 = vsyncpa [#allocation4], 0
    %s12 = scalar_lea.sflag [#allocation4], 1
    %13 = vsyncpa %s12, 0
    loop: start=0, step=1, limit=4
    $region2: #{tpu_custom_call.1} parent=1 // loop_pre_header
      _
    $region3: #{tpu_custom_call.1} parent=1 // loop_header
      %s15 = sphi 0, %s19
      %p16 = scmp.ge.s32.totalorder %s15, 4
      %s22 = sphi 0, %s34
      %s23 = sphi 0, %s30
      %s24 = sphi 0, %s22
      %s25 = sphi 0, %s23
      %s26 = sphi 0, %s24
      %s27 = sphi 0, %s25
      %s39 = sphi 0, %s41
      %s42 = sphi 0, %s39
      %s43 = sphi 0, %s42
      %s59 = sphi 0, %s43
      %s63 = sphi 0, %s63
      %s65 = sphi 0, %s63
      %s66 = sphi 0, %s65
      %s80 = sphi 0, %s66
      %s88 = sphi 0, %s90
      %s91 = sphi 0, %s88
      %s92 = sphi 0, %s91
      %s108 = sphi 0, %s92
    $region4: #{tpu_custom_call.1} parent=1 // loop_header_branch
      %18 = sbr.rel (%p16) target = $region8
    $region5: #{tpu_custom_call.1} parent=1 // loop_body
      %s20 = ssub.s32 %s15, 1
      %s21 = ssub.s32 %s15, 2
      %s28 = sadd.s32 1, %s23
      %p29 = scmp.ge.s32.totalorder %s28, 1
      %s30 = scalar_select %p29, 0, %s28
      %s31 = sadd.s32 1, %s22
      %s32 = scalar_select %p29, %s31, %s22
      %p33 = scmp.ge.s32.totalorder %s32, 2
      %s34 = scalar_select %p33, 0, %s32
      %s35 = ssub.s32 %s22, %s34
      %s36 = ssub.s32 %s23, %s30
      %s37 = sor.u32 %s35, %s36
      %p38 = scmp.eq.s32.totalorder %s37, 0
      %s40 = sadd.s32 %s39, 1
      %s41 = scalar_select %p38, %s39, %s40
      %p44 = pneg %p38
      %p45 = scmp.eq.s32.totalorder %s15, 1
      %p46 = por %p44, %p45
      %p47 = scmp.ne.s32.totalorder %s39, %s42
      %p48 = scmp.eq.s32.totalorder %s15, 0
      %p49 = por %p47, %p48
      %p50 = scmp.ne.s32.totalorder %s39, %s42
      %p51 = scmp.eq.s32.totalorder %s20, 1
      %p52 = por %p50, %p51
      %p53 = scmp.ne.s32.totalorder %s42, %s43
      %p54 = scmp.eq.s32.totalorder %s20, 0
      %p55 = por %p53, %p54
      %p56 = scmp.ne.s32.totalorder %s42, %s43
      %p57 = scmp.eq.s32.totalorder %s21, 1
      %p58 = por %p56, %p57
      %p60 = scmp.ne.s32.totalorder %s43, %s59
      %p61 = scmp.eq.s32.totalorder %s21, 0
      %p62 = por %p60, %p61
      %s64 = sadd.s32 %s63, 1
      %p67 = scmp.eq.s32.totalorder %s15, 1
      %p68 = scmp.ne.s32.totalorder %s63, %s65
      %p69 = scmp.eq.s32.totalorder %s15, 0
      %p70 = por %p68, %p69
      %p71 = scmp.ne.s32.totalorder %s63, %s65
      %p72 = scmp.eq.s32.totalorder %s20, 1
      %p73 = por %p71, %p72
      %p74 = scmp.ne.s32.totalorder %s65, %s66
      %p75 = scmp.eq.s32.totalorder %s20, 0
      %p76 = por %p74, %p75
      %p77 = scmp.ne.s32.totalorder %s65, %s66
      %p78 = scmp.eq.s32.totalorder %s21, 1
      %p79 = por %p77, %p78
      %p81 = scmp.ne.s32.totalorder %s66, %s80
      %p82 = scmp.eq.s32.totalorder %s21, 0
      %p83 = por %p81, %p82
      %s84 = ssub.s32 %s22, %s34
      %s85 = ssub.s32 %s23, %s30
      %s86 = sor.u32 %s84, %s85
      %p87 = scmp.eq.s32.totalorder %s86, 0
      %s89 = sadd.s32 %s88, 1
      %s90 = scalar_select %p87, %s88, %s89
      %p93 = pneg %p87
      %p94 = scmp.eq.s32.totalorder %s15, 1
      %p95 = por %p93, %p94
      %p96 = scmp.ne.s32.totalorder %s88, %s91
      %p97 = scmp.eq.s32.totalorder %s15, 0
      %p98 = por %p96, %p97
      %p99 = scmp.ne.s32.totalorder %s88, %s91
      %p100 = scmp.eq.s32.totalorder %s20, 1
      %p101 = por %p99, %p100
      %p102 = scmp.ne.s32.totalorder %s91, %s92
      %p103 = scmp.eq.s32.totalorder %s20, 0
      %p104 = por %p102, %p103
      %p105 = scmp.ne.s32.totalorder %s91, %s92
      %p106 = scmp.eq.s32.totalorder %s21, 1
      %p107 = por %p105, %p106
      %p109 = scmp.ne.s32.totalorder %s92, %s108
      %p110 = scmp.eq.s32.totalorder %s21, 0
      %p111 = por %p109, %p110
      %p112 = scmp.le.s32.totalorder 1, %s15
      %p113 = scmp.lt.s32.totalorder %s15, 3
      %p114 = pnand %p112, %p113
      %p115 = pneg %p114
      // Predicated region
      $region9: #{tpu_custom_call.1} parent=5 // pred_check
        _
      $region10: #{tpu_custom_call.1} parent=5 // pred_check_branch
        %117 = sbr.rel (%p114) target = $region12
      $region11: #{tpu_custom_call.1} parent=5 // pred_region
        %s118 = ssub.s32 %s15, 1
        // Predicated region
        $region13: #{tpu_custom_call.1} parent=11 // pred_check
          %p119 = pneg %p76
        $region14: #{tpu_custom_call.1} parent=11 // pred_check_branch
          %121 = sbr.rel (%p119) target = $region16
        $region15: #{tpu_custom_call.1} parent=11 // pred_region
          %s123 = ssub.s32 1024, 1024
          %124 = vsyncadd [#allocation6], %s123
          %s125 = sshll.u32 [#allocation5], 4
          %s126 = int_to_ptr.vmem [resolvable:$true] %s125
          %131 = dma.hbm_to_vmem [thread:$0]  %s1, 1024, %s126, [#allocation6], 128, 128, 8
        $region16: #{tpu_custom_call.1} parent=11 // pred_fallthru
          _
      $region12: #{tpu_custom_call.1} parent=5 // pred_fallthru
        _
      %p132 = scmp.lt.s32.totalorder %s15, 2
      // Predicated region
      $region17: #{tpu_custom_call.1} parent=5 // pred_check
        %p133 = pneg %p132
      $region18: #{tpu_custom_call.1} parent=5 // pred_check_branch
        %135 = sbr.rel (%p133) target = $region20
      $region19: #{tpu_custom_call.1} parent=5 // pred_region
        // Predicated region
        $region21: #{tpu_custom_call.1} parent=19 // pred_check
          %p136 = pneg %p49
        $region22: #{tpu_custom_call.1} parent=19 // pred_check_branch
          %138 = sbr.rel (%p136) target = $region24
        $region23: #{tpu_custom_call.1} parent=19 // pred_region
          %s139 = sand.u32 %s39, 1
          %s140 = scalar_lea.sflag [#allocation3], %s139
          %s141 = sand.u32 %s39, 1
          %s142 = smul.addr %s141, 64
          %s143 = scalar_lea.vmem [#allocation2], %s142
          %s144 = smul.u32 2, %s23
          %s146 = ssub.s32 1024, 1024
          %147 = vsyncadd %s140, %s146
          %s148 = smul.addr %s22, 8
          %s149 = sadd.s32 %s144, %s148
          %s150 = smul.addr %s149, 128
          %s151 = scalar_lea.hbm %s0, %s150
          %s152 = sshll.u32 %s143, 4
          %s153 = int_to_ptr.vmem [resolvable:$true] %s152
          %158 = dma.hbm_to_vmem [thread:$0]  %s151, 1024, %s153, %s140, 128, 128, 8
        $region24: #{tpu_custom_call.1} parent=19 // pred_fallthru
          _
      $region20: #{tpu_custom_call.1} parent=5 // pred_fallthru
        _
      %p159 = scmp.le.s32.totalorder 1, %s15
      %p160 = scmp.lt.s32.totalorder %s15, 3
      %p161 = pnand %p159, %p160
      %p162 = pneg %p161
      // Predicated region
      $region25: #{tpu_custom_call.1} parent=5 // pred_check
        _
      $region26: #{tpu_custom_call.1} parent=5 // pred_check_branch
        %164 = sbr.rel (%p161) target = $region28
      $region27: #{tpu_custom_call.1} parent=5 // pred_region
        %s165 = ssub.s32 %s15, 1
        %s166 = sand.u32 %s42, 1
        %s167 = scalar_lea.sflag [#allocation3], %s166
        %s168 = sand.u32 %s42, 1
        %s169 = smul.addr %s168, 64
        %s170 = scalar_lea.vmem [#allocation2], %s169
        // Predicated region
        $region29: #{tpu_custom_call.1} parent=27 // pred_check
          %p171 = pneg %p55
        $region30: #{tpu_custom_call.1} parent=27 // pred_check_branch
          %173 = sbr.rel (%p171) target = $region32
        $region31: #{tpu_custom_call.1} parent=27 // pred_region
          %174 = dma.done %s167, 1024
        $region32: #{tpu_custom_call.1} parent=27 // pred_fallthru
          _
        // Predicated region
        $region33: #{tpu_custom_call.1} parent=27 // pred_check
          %p175 = pneg %p76
        $region34: #{tpu_custom_call.1} parent=27 // pred_check_branch
          %177 = sbr.rel (%p175) target = $region36
        $region35: #{tpu_custom_call.1} parent=27 // pred_region
          %178 = dma.done [#allocation6], 1024
        $region36: #{tpu_custom_call.1} parent=27 // pred_fallthru
          _
        %s179 = sand.u32 %s42, 1
        %s180 = scalar_lea.sflag [#allocation3], %s179
        %s181 = sand.u32 %s42, 1
        %s182 = smul.addr %s181, 64
        %s183 = scalar_lea.vmem [#allocation2], %s182
        %p184 = pneg %p55
        %p185 = pneg %p52
        %p186 = pneg %p76
        %p187 = pneg %p73
        %p188 = pneg %p104
        %p189 = pneg %p101
        %s190 = sand.u32 %s91, 1
        %s191 = scalar_lea.sflag [#allocation4], %s190
        %s192 = sand.u32 %s91, 1
        %s193 = smul.addr %s192, 16
        %s194 = scalar_lea.vmem [#allocation7], %s193
        %s195 = smul.u32 2, %s25
        %s196 = smul.u32 2, %s25
        %v197 = vld [vmem:[%s170] sm:$0xff]
        %v198 = vld [vmem:[%s170 + $0x8] sm:$0xff]
        %v199 = vld [vmem:[#allocation5] sm:$0xff]
        %v200 = vld [vmem:[#allocation5 + $0x8] sm:$0xff]
        %s201 = scalar_lea.vmem %s170, 16 [#allocation2]
        %v202 = vld [vmem:[%s201] sm:$0xff]
        %v203 = vld [vmem:[%s201 + $0x8] sm:$0xff]
        %s204 = scalar_lea.vmem [#allocation5], 16
        %v205 = vld [vmem:[%s204] sm:$0xff]
        %v206 = vld [vmem:[%s204 + $0x8] sm:$0xff]
        %vm207 = vcmask 130048
        %v209 = vsel %vm207, %v202, 0
        %v212 = vsel %vm207, %v203, 0
        %214 = vmatprep.subr.mxu0 0.0
        %v215 = vand.u32 %v205, 4294901760
        %216 = vmatpush1.msra.mxu0 %v215
        %217 = vmatprep.subr.mxu0 0.0
        %v218 = vand.u32 %v206, 4294901760
        %219 = vmatpush1.msra.mxu0 %v218
        %220 = vmatprep.subr.mxu0 0.0
        %221 = vmatpush1.msra.mxu0 0.0
        %222 = vmatprep.subr.mxu0 0.0
        %223 = vmatpush1.msra.mxu0 0.0
        %224 = vmatprep.subr.mxu0 0.0
        %225 = vmatpush1.msra.mxu0 0.0
        %226 = vmatprep.subr.mxu0 0.0
        %227 = vmatpush1.msra.mxu0 0.0
        %228 = vmatprep.subr.mxu0 0.0
        %229 = vmatpush1.msra.mxu0 0.0
        %230 = vmatprep.subr.mxu0 0.0
        %231 = vmatpush1.msra.mxu0 0.0
        %232 = vmatprep.subr.mxu0 0.0
        %233 = vmatpush1.msra.mxu0 0.0
        %234 = vmatprep.subr.mxu0 0.0
        %235 = vmatpush1.msra.mxu0 0.0
        %236 = vmatprep.subr.mxu0 0.0
        %237 = vmatpush1.msra.mxu0 0.0
        %238 = vmatprep.subr.mxu0 0.0
        %239 = vmatpush1.msra.mxu0 0.0
        %240 = vmatprep.subr.mxu0 0.0
        %241 = vmatpush1.msra.mxu0 0.0
        %242 = vmatprep.subr.mxu0 0.0
        %243 = vmatpush1.msra.mxu0 0.0
        %244 = vmatprep.subr.mxu0 0.0
        %245 = vmatpush1.msra.mxu0 0.0
        %246 = vmatprep.subr.mxu0 0.0
        %247 = vmatpush1.msra.mxu0 0.0
        %248 = vmatprep.subr.mxu0 0.0
        %249 = vmatpush1.msra.mxu0 0.0
        %250 = vmatprep.subr.mxu0 0.0
        %251 = vmatpush1.msra.mxu0 0.0
        %252 = vmatprep.subr.mxu0 0.0
        %253 = vmatpush1.msra.mxu0 0.0
        %254 = vmatprep.subr.mxu0 0.0
        %255 = vmatpush1.msra.mxu0 0.0
        %256 = vmatprep.subr.mxu0 0.0
        %257 = vmatpush1.msra.mxu0 0.0
        %258 = vmatprep.subr.mxu0 0.0
        %259 = vmatpush1.msra.mxu0 0.0
        %260 = vmatprep.subr.mxu0 0.0
        %261 = vmatpush1.msra.mxu0 0.0
        %262 = vmatprep.subr.mxu0 0.0
        %263 = vmatpush1.msra.mxu0 0.0
        %264 = vmatprep.subr.mxu0 0.0
        %265 = vmatpush1.msra.mxu0 0.0
        %266 = vmatprep.subr.mxu0 0.0
        %267 = vmatpush1.msra.mxu0 0.0
        %268 = vmatprep.subr.mxu0 0.0
        %269 = vmatpush1.msra.mxu0 0.0
        %270 = vmatprep.subr.mxu0 0.0
        %271 = vmatpush1.msra.mxu0 0.0
        %272 = vmatprep.subr.mxu0 0.0
        %273 = vmatpush1.msra.mxu0 0.0
        %274 = vmatprep.subr.mxu0 0.0
        %275 = vmatpush1.msra.mxu0 0.0
        %276 = vmatprep.subr.mxu0 0.0
        %277 = vmatpush1.msra.mxu0 0.0
        %278 = vmatprep.subr.mxu0 0.0
        %279 = vmatpush1.msra.mxu0 0.0
        %280 = vmatprep.mubr.f32.mxu0 0.0
        %v281 = vand.u32 %v209, 4294901760
        %v282 = vsub.f32 %v209, %v281
        %v283 = vand.u32 %v282, 4294901760
        %v284 = vsub.f32 %v282, %v283
        %v285 = vand.u32 %v284, 4294901760
        %286 = vmatmul.mubr.f32.gmra.mrb[0].mxu0 %v285
        %v287 = vpop.f32.mrb[0].mxu0
        %v288 = vadd.f32 0.0, %v287
        %v289 = vpop.f32.mrb[0].mxu0
        %290 = vmatprep.mubr.f32.mxu0 0.0
        %v291 = vand.u32 %v212, 4294901760
        %v292 = vsub.f32 %v212, %v291
        %v293 = vand.u32 %v292, 4294901760
        %v294 = vsub.f32 %v292, %v293
        %v295 = vand.u32 %v294, 4294901760
        %296 = vmatmul.mubr.f32.gmra.mrb[0].mxu0 %v295
        %v297 = vpop.f32.mrb[0].mxu0
        %v298 = vadd.f32 0.0, %v297
        %v299 = vpop.f32.mrb[0].mxu0
        %300 = vdwg.mxu0
        %301 = vmatprep.subr.mxu0 0.0
        %v302 = vand.u32 %v205, 4294901760
        %v303 = vsub.f32 %v205, %v302
        %v304 = vand.u32 %v303, 4294901760
        %v305 = vsub.f32 %v303, %v304
        %v306 = vand.u32 %v305, 4294901760
        %307 = vmatpush1.msra.mxu0 %v306
        %308 = vmatprep.subr.mxu0 0.0
        %v309 = vand.u32 %v206, 4294901760
        %v310 = vsub.f32 %v206, %v309
        %v311 = vand.u32 %v310, 4294901760
        %v312 = vsub.f32 %v310, %v311
        %v313 = vand.u32 %v312, 4294901760
        %314 = vmatpush1.msra.mxu0 %v313
        %315 = vmatprep.subr.mxu0 0.0
        %316 = vmatpush1.msra.mxu0 0.0
        %317 = vmatprep.subr.mxu0 0.0
        %318 = vmatpush1.msra.mxu0 0.0
        %319 = vmatprep.subr.mxu0 0.0
        %320 = vmatpush1.msra.mxu0 0.0
        %321 = vmatprep.subr.mxu0 0.0
        %322 = vmatpush1.msra.mxu0 0.0
        %323 = vmatprep.subr.mxu0 0.0
        %324 = vmatpush1.msra.mxu0 0.0
        %325 = vmatprep.subr.mxu0 0.0
        %326 = vmatpush1.msra.mxu0 0.0
        %327 = vmatprep.subr.mxu0 0.0
        %328 = vmatpush1.msra.mxu0 0.0
        %329 = vmatprep.subr.mxu0 0.0
        %330 = vmatpush1.msra.mxu0 0.0
        %331 = vmatprep.subr.mxu0 0.0
        %332 = vmatpush1.msra.mxu0 0.0
        %333 = vmatprep.subr.mxu0 0.0
        %334 = vmatpush1.msra.mxu0 0.0
        %335 = vmatprep.subr.mxu0 0.0
        %336 = vmatpush1.msra.mxu0 0.0
        %337 = vmatprep.subr.mxu0 0.0
        %338 = vmatpush1.msra.mxu0 0.0
        %339 = vmatprep.subr.mxu0 0.0
        %340 = vmatpush1.msra.mxu0 0.0
        %341 = vmatprep.subr.mxu0 0.0
        %342 = vmatpush1.msra.mxu0 0.0
        %343 = vmatprep.subr.mxu0 0.0
        %344 = vmatpush1.msra.mxu0 0.0
        %345 = vmatprep.subr.mxu0 0.0
        %346 = vmatpush1.msra.mxu0 0.0
        %347 = vmatprep.subr.mxu0 0.0
        %348 = vmatpush1.msra.mxu0 0.0
        %349 = vmatprep.subr.mxu0 0.0
        %350 = vmatpush1.msra.mxu0 0.0
        %351 = vmatprep.subr.mxu0 0.0
        %352 = vmatpush1.msra.mxu0 0.0
        %353 = vmatprep.subr.mxu0 0.0
        %354 = vmatpush1.msra.mxu0 0.0
        %355 = vmatprep.subr.mxu0 0.0
        %356 = vmatpush1.msra.mxu0 0.0
        %357 = vmatprep.subr.mxu0 0.0
        %358 = vmatpush1.msra.mxu0 0.0
        %359 = vmatprep.subr.mxu0 0.0
        %360 = vmatpush1.msra.mxu0 0.0
        %361 = vmatprep.subr.mxu0 0.0
        %362 = vmatpush1.msra.mxu0 0.0
        %363 = vmatprep.subr.mxu0 0.0
        %364 = vmatpush1.msra.mxu0 0.0
        %365 = vmatprep.subr.mxu0 0.0
        %366 = vmatpush1.msra.mxu0 0.0
        %367 = vmatprep.subr.mxu0 0.0
        %368 = vmatpush1.msra.mxu0 0.0
        %369 = vmatprep.subr.mxu0 0.0
        %370 = vmatpush1.msra.mxu0 0.0
        %371 = vmatprep.subr.mxu0 0.0
        %372 = vmatpush1.msra.mxu0 0.0
        %373 = vmatprep.subr.mxu0 0.0
        %374 = vmatpush1.msra.mxu0 0.0
        %375 = vmatprep.mubr.f32.mxu0 0.0
        %v376 = vand.u32 %v209, 4294901760
        %377 = vmatmul.mubr.f32.gmra.mrb[0].mxu0 %v376
        %v378 = vpop.f32.mrb[0].mxu0
        %v379 = vadd.f32 %v288, %v378
        %v380 = vpop.f32.mrb[0].mxu0
        %381 = vmatprep.mubr.f32.mxu0 0.0
        %v382 = vand.u32 %v212, 4294901760
        %383 = vmatmul.mubr.f32.gmra.mrb[0].mxu0 %v382
        %v384 = vpop.f32.mrb[0].mxu0
        %v385 = vadd.f32 %v298, %v384
        %v386 = vpop.f32.mrb[0].mxu0
        %387 = vdwg.mxu0
        %388 = vmatprep.subr.mxu0 0.0
        %v389 = vand.u32 %v205, 4294901760
        %v390 = vsub.f32 %v205, %v389
        %391 = vmatpush1.msra.mxu0 %v390
        %392 = vmatprep.subr.mxu0 0.0
        %v393 = vand.u32 %v206, 4294901760
        %v394 = vsub.f32 %v206, %v393
        %395 = vmatpush1.msra.mxu0 %v394
        %396 = vmatprep.subr.mxu0 0.0
        %397 = vmatpush1.msra.mxu0 0.0
        %398 = vmatprep.subr.mxu0 0.0
        %399 = vmatpush1.msra.mxu0 0.0
        %400 = vmatprep.subr.mxu0 0.0
        %401 = vmatpush1.msra.mxu0 0.0
        %402 = vmatprep.subr.mxu0 0.0
        %403 = vmatpush1.msra.mxu0 0.0
        %404 = vmatprep.subr.mxu0 0.0
        %405 = vmatpush1.msra.mxu0 0.0
        %406 = vmatprep.subr.mxu0 0.0
        %407 = vmatpush1.msra.mxu0 0.0
        %408 = vmatprep.subr.mxu0 0.0
        %409 = vmatpush1.msra.mxu0 0.0
        %410 = vmatprep.subr.mxu0 0.0
        %411 = vmatpush1.msra.mxu0 0.0
        %412 = vmatprep.subr.mxu0 0.0
        %413 = vmatpush1.msra.mxu0 0.0
        %414 = vmatprep.subr.mxu0 0.0
        %415 = vmatpush1.msra.mxu0 0.0
        %416 = vmatprep.subr.mxu0 0.0
        %417 = vmatpush1.msra.mxu0 0.0
        %418 = vmatprep.subr.mxu0 0.0
        %419 = vmatpush1.msra.mxu0 0.0
        %420 = vmatprep.subr.mxu0 0.0
        %421 = vmatpush1.msra.mxu0 0.0
        %422 = vmatprep.subr.mxu0 0.0
        %423 = vmatpush1.msra.mxu0 0.0
        %424 = vmatprep.subr.mxu0 0.0
        %425 = vmatpush1.msra.mxu0 0.0
        %426 = vmatprep.subr.mxu0 0.0
        %427 = vmatpush1.msra.mxu0 0.0
        %428 = vmatprep.subr.mxu0 0.0
        %429 = vmatpush1.msra.mxu0 0.0
        %430 = vmatprep.subr.mxu0 0.0
        %431 = vmatpush1.msra.mxu0 0.0
        %432 = vmatprep.subr.mxu0 0.0
        %433 = vmatpush1.msra.mxu0 0.0
        %434 = vmatprep.subr.mxu0 0.0
        %435 = vmatpush1.msra.mxu0 0.0
        %436 = vmatprep.subr.mxu0 0.0
        %437 = vmatpush1.msra.mxu0 0.0
        %438 = vmatprep.subr.mxu0 0.0
        %439 = vmatpush1.msra.mxu0 0.0
        %440 = vmatprep.subr.mxu0 0.0
        %441 = vmatpush1.msra.mxu0 0.0
        %442 = vmatprep.subr.mxu0 0.0
        %443 = vmatpush1.msra.mxu0 0.0
        %444 = vmatprep.subr.mxu0 0.0
        %445 = vmatpush1.msra.mxu0 0.0
        %446 = vmatprep.subr.mxu0 0.0
        %447 = vmatpush1.msra.mxu0 0.0
        %448 = vmatprep.subr.mxu0 0.0
        %449 = vmatpush1.msra.mxu0 0.0
        %450 = vmatprep.subr.mxu0 0.0
        %451 = vmatpush1.msra.mxu0 0.0
        %452 = vmatprep.subr.mxu0 0.0
        %453 = vmatpush1.msra.mxu0 0.0
        %454 = vmatprep.subr.mxu0 0.0
        %455 = vmatpush1.msra.mxu0 0.0
        %456 = vmatprep.mubr.f32.mxu0 0.0
        %v457 = vand.u32 %v209, 4294901760
        %v458 = vsub.f32 %v209, %v457
        %459 = vmatmul.mubr.f32.gmra.mrb[0].mxu0 %v458
        %v460 = vpop.f32.mrb[0].mxu0
        %v461 = vadd.f32 %v379, %v460
        %v462 = vpop.f32.mrb[0].mxu0
        %463 = vmatprep.mubr.f32.mxu0 0.0
        %v464 = vand.u32 %v212, 4294901760
        %v465 = vsub.f32 %v212, %v464
        %466 = vmatmul.mubr.f32.gmra.mrb[0].mxu0 %v465
        %v467 = vpop.f32.mrb[0].mxu0
        %v468 = vadd.f32 %v385, %v467
        %v469 = vpop.f32.mrb[0].mxu0
        %470 = vdwg.mxu0
        %471 = vmatprep.subr.mxu0 0.0
        %v472 = vand.u32 %v205, 4294901760
        %473 = vmatpush1.msra.mxu0 %v472
        %474 = vmatprep.subr.mxu0 0.0
        %v475 = vand.u32 %v206, 4294901760
        %476 = vmatpush1.msra.mxu0 %v475
        %477 = vmatprep.subr.mxu0 0.0
        %478 = vmatpush1.msra.mxu0 0.0
        %479 = vmatprep.subr.mxu0 0.0
        %480 = vmatpush1.msra.mxu0 0.0
        %481 = vmatprep.subr.mxu0 0.0
        %482 = vmatpush1.msra.mxu0 0.0
        %483 = vmatprep.subr.mxu0 0.0
        %484 = vmatpush1.msra.mxu0 0.0
        %485 = vmatprep.subr.mxu0 0.0
        %486 = vmatpush1.msra.mxu0 0.0
        %487 = vmatprep.subr.mxu0 0.0
        %488 = vmatpush1.msra.mxu0 0.0
        %489 = vmatprep.subr.mxu0 0.0
        %490 = vmatpush1.msra.mxu0 0.0
        %491 = vmatprep.subr.mxu0 0.0
        %492 = vmatpush1.msra.mxu0 0.0
        %493 = vmatprep.subr.mxu0 0.0
        %494 = vmatpush1.msra.mxu0 0.0
        %495 = vmatprep.subr.mxu0 0.0
        %496 = vmatpush1.msra.mxu0 0.0
        %497 = vmatprep.subr.mxu0 0.0
        %498 = vmatpush1.msra.mxu0 0.0
        %499 = vmatprep.subr.mxu0 0.0
        %500 = vmatpush1.msra.mxu0 0.0
        %501 = vmatprep.subr.mxu0 0.0
        %502 = vmatpush1.msra.mxu0 0.0
        %503 = vmatprep.subr.mxu0 0.0
        %504 = vmatpush1.msra.mxu0 0.0
        %505 = vmatprep.subr.mxu0 0.0
        %506 = vmatpush1.msra.mxu0 0.0
        %507 = vmatprep.subr.mxu0 0.0
        %508 = vmatpush1.msra.mxu0 0.0
        %509 = vmatprep.subr.mxu0 0.0
        %510 = vmatpush1.msra.mxu0 0.0
        %511 = vmatprep.subr.mxu0 0.0
        %512 = vmatpush1.msra.mxu0 0.0
        %513 = vmatprep.subr.mxu0 0.0
        %514 = vmatpush1.msra.mxu0 0.0
        %515 = vmatprep.subr.mxu0 0.0
        %516 = vmatpush1.msra.mxu0 0.0
        %517 = vmatprep.subr.mxu0 0.0
        %518 = vmatpush1.msra.mxu0 0.0
        %519 = vmatprep.subr.mxu0 0.0
        %520 = vmatpush1.msra.mxu0 0.0
        %521 = vmatprep.subr.mxu0 0.0
        %522 = vmatpush1.msra.mxu0 0.0
        %523 = vmatprep.subr.mxu0 0.0
        %524 = vmatpush1.msra.mxu0 0.0
        %525 = vmatprep.subr.mxu0 0.0
        %526 = vmatpush1.msra.mxu0 0.0
        %527 = vmatprep.subr.mxu0 0.0
        %528 = vmatpush1.msra.mxu0 0.0
        %529 = vmatprep.subr.mxu0 0.0
        %530 = vmatpush1.msra.mxu0 0.0
        %531 = vmatprep.subr.mxu0 0.0
        %532 = vmatpush1.msra.mxu0 0.0
        %533 = vmatprep.subr.mxu0 0.0
        %534 = vmatpush1.msra.mxu0 0.0
        %535 = vmatprep.subr.mxu0 0.0
        %536 = vmatpush1.msra.mxu0 0.0
        %537 = vmatprep.mubr.f32.mxu0 0.0
        %v538 = vand.u32 %v209, 4294901760
        %v539 = vsub.f32 %v209, %v538
        %v540 = vand.u32 %v539, 4294901760
        %541 = vmatmul.mubr.f32.gmra.mrb[0].mxu0 %v540
        %v542 = vpop.f32.mrb[0].mxu0
        %v543 = vadd.f32 %v461, %v542
        %v544 = vpop.f32.mrb[0].mxu0
        %545 = vmatprep.mubr.f32.mxu0 0.0
        %v546 = vand.u32 %v212, 4294901760
        %v547 = vsub.f32 %v212, %v546
        %v548 = vand.u32 %v547, 4294901760
        %549 = vmatmul.mubr.f32.gmra.mrb[0].mxu0 %v548
        %v550 = vpop.f32.mrb[0].mxu0
        %v551 = vadd.f32 %v468, %v550
        %v552 = vpop.f32.mrb[0].mxu0
        %553 = vdwg.mxu0
        %554 = vmatprep.subr.mxu0 0.0
        %v555 = vand.u32 %v205, 4294901760
        %v556 = vsub.f32 %v205, %v555
        %v557 = vand.u32 %v556, 4294901760
        %558 = vmatpush1.msra.mxu0 %v557
        %559 = vmatprep.subr.mxu0 0.0
        %v560 = vand.u32 %v206, 4294901760
        %v561 = vsub.f32 %v206, %v560
        %v562 = vand.u32 %v561, 4294901760
        %563 = vmatpush1.msra.mxu0 %v562
        %564 = vmatprep.subr.mxu0 0.0
        %565 = vmatpush1.msra.mxu0 0.0
        %566 = vmatprep.subr.mxu0 0.0
        %567 = vmatpush1.msra.mxu0 0.0
        %568 = vmatprep.subr.mxu0 0.0
        %569 = vmatpush1.msra.mxu0 0.0
        %570 = vmatprep.subr.mxu0 0.0
        %571 = vmatpush1.msra.mxu0 0.0
        %572 = vmatprep.subr.mxu0 0.0
        %573 = vmatpush1.msra.mxu0 0.0
        %574 = vmatprep.subr.mxu0 0.0
        %575 = vmatpush1.msra.mxu0 0.0
        %576 = vmatprep.subr.mxu0 0.0
        %577 = vmatpush1.msra.mxu0 0.0
        %578 = vmatprep.subr.mxu0 0.0
        %579 = vmatpush1.msra.mxu0 0.0
        %580 = vmatprep.subr.mxu0 0.0
        %581 = vmatpush1.msra.mxu0 0.0
        %582 = vmatprep.subr.mxu0 0.0
        %583 = vmatpush1.msra.mxu0 0.0
        %584 = vmatprep.subr.mxu0 0.0
        %585 = vmatpush1.msra.mxu0 0.0
        %586 = vmatprep.subr.mxu0 0.0
        %587 = vmatpush1.msra.mxu0 0.0
        %588 = vmatprep.subr.mxu0 0.0
        %589 = vmatpush1.msra.mxu0 0.0
        %590 = vmatprep.subr.mxu0 0.0
        %591 = vmatpush1.msra.mxu0 0.0
        %592 = vmatprep.subr.mxu0 0.0
        %593 = vmatpush1.msra.mxu0 0.0
        %594 = vmatprep.subr.mxu0 0.0
        %595 = vmatpush1.msra.mxu0 0.0
        %596 = vmatprep.subr.mxu0 0.0
        %597 = vmatpush1.msra.mxu0 0.0
        %598 = vmatprep.subr.mxu0 0.0
        %599 = vmatpush1.msra.mxu0 0.0
        %600 = vmatprep.subr.mxu0 0.0
        %601 = vmatpush1.msra.mxu0 0.0
        %602 = vmatprep.subr.mxu0 0.0
        %603 = vmatpush1.msra.mxu0 0.0
        %604 = vmatprep.subr.mxu0 0.0
        %605 = vmatpush1.msra.mxu0 0.0
        %606 = vmatprep.subr.mxu0 0.0
        %607 = vmatpush1.msra.mxu0 0.0
        %608 = vmatprep.subr.mxu0 0.0
        %609 = vmatpush1.msra.mxu0 0.0
        %610 = vmatprep.subr.mxu0 0.0
        %611 = vmatpush1.msra.mxu0 0.0
        %612 = vmatprep.subr.mxu0 0.0
        %613 = vmatpush1.msra.mxu0 0.0
        %614 = vmatprep.subr.mxu0 0.0
        %615 = vmatpush1.msra.mxu0 0.0
        %616 = vmatprep.subr.mxu0 0.0
        %617 = vmatpush1.msra.mxu0 0.0
        %618 = vmatprep.subr.mxu0 0.0
        %619 = vmatpush1.msra.mxu0 0.0
        %620 = vmatprep.subr.mxu0 0.0
        %621 = vmatpush1.msra.mxu0 0.0
        %622 = vmatprep.subr.mxu0 0.0
        %623 = vmatpush1.msra.mxu0 0.0
        %624 = vmatprep.mubr.f32.mxu0 0.0
        %v625 = vand.u32 %v209, 4294901760
        %626 = vmatmul.mubr.f32.gmra.mrb[0].mxu0 %v625
        %v627 = vpop.f32.mrb[0].mxu0
        %v628 = vadd.f32 %v543, %v627
        %v629 = vpop.f32.mrb[0].mxu0
        %630 = vmatprep.mubr.f32.mxu0 0.0
        %v631 = vand.u32 %v212, 4294901760
        %632 = vmatmul.mubr.f32.gmra.mrb[0].mxu0 %v631
        %v633 = vpop.f32.mrb[0].mxu0
        %v634 = vadd.f32 %v551, %v633
        %v635 = vpop.f32.mrb[0].mxu0
        %636 = vdwg.mxu0
        %637 = vmatprep.subr.mxu0 0.0
        %v638 = vand.u32 %v205, 4294901760
        %639 = vmatpush1.msra.mxu0 %v638
        %640 = vmatprep.subr.mxu0 0.0
        %v641 = vand.u32 %v206, 4294901760
        %642 = vmatpush1.msra.mxu0 %v641
        %643 = vmatprep.subr.mxu0 0.0
        %644 = vmatpush1.msra.mxu0 0.0
        %645 = vmatprep.subr.mxu0 0.0
        %646 = vmatpush1.msra.mxu0 0.0
        %647 = vmatprep.subr.mxu0 0.0
        %648 = vmatpush1.msra.mxu0 0.0
        %649 = vmatprep.subr.mxu0 0.0
        %650 = vmatpush1.msra.mxu0 0.0
        %651 = vmatprep.subr.mxu0 0.0
        %652 = vmatpush1.msra.mxu0 0.0
        %653 = vmatprep.subr.mxu0 0.0
        %654 = vmatpush1.msra.mxu0 0.0
        %655 = vmatprep.subr.mxu0 0.0
        %656 = vmatpush1.msra.mxu0 0.0
        %657 = vmatprep.subr.mxu0 0.0
        %658 = vmatpush1.msra.mxu0 0.0
        %659 = vmatprep.subr.mxu0 0.0
        %660 = vmatpush1.msra.mxu0 0.0
        %661 = vmatprep.subr.mxu0 0.0
        %662 = vmatpush1.msra.mxu0 0.0
        %663 = vmatprep.subr.mxu0 0.0
        %664 = vmatpush1.msra.mxu0 0.0
        %665 = vmatprep.subr.mxu0 0.0
        %666 = vmatpush1.msra.mxu0 0.0
        %667 = vmatprep.subr.mxu0 0.0
        %668 = vmatpush1.msra.mxu0 0.0
        %669 = vmatprep.subr.mxu0 0.0
        %670 = vmatpush1.msra.mxu0 0.0
        %671 = vmatprep.subr.mxu0 0.0
        %672 = vmatpush1.msra.mxu0 0.0
        %673 = vmatprep.subr.mxu0 0.0
        %674 = vmatpush1.msra.mxu0 0.0
        %675 = vmatprep.subr.mxu0 0.0
        %676 = vmatpush1.msra.mxu0 0.0
        %677 = vmatprep.subr.mxu0 0.0
        %678 = vmatpush1.msra.mxu0 0.0
        %679 = vmatprep.subr.mxu0 0.0
        %680 = vmatpush1.msra.mxu0 0.0
        %681 = vmatprep.subr.mxu0 0.0
        %682 = vmatpush1.msra.mxu0 0.0
        %683 = vmatprep.subr.mxu0 0.0
        %684 = vmatpush1.msra.mxu0 0.0
        %685 = vmatprep.subr.mxu0 0.0
        %686 = vmatpush1.msra.mxu0 0.0
        %687 = vmatprep.subr.mxu0 0.0
        %688 = vmatpush1.msra.mxu0 0.0
        %689 = vmatprep.subr.mxu0 0.0
        %690 = vmatpush1.msra.mxu0 0.0
        %691 = vmatprep.subr.mxu0 0.0
        %692 = vmatpush1.msra.mxu0 0.0
        %693 = vmatprep.subr.mxu0 0.0
        %694 = vmatpush1.msra.mxu0 0.0
        %695 = vmatprep.subr.mxu0 0.0
        %696 = vmatpush1.msra.mxu0 0.0
        %697 = vmatprep.subr.mxu0 0.0
        %698 = vmatpush1.msra.mxu0 0.0
        %699 = vmatprep.subr.mxu0 0.0
        %700 = vmatpush1.msra.mxu0 0.0
        %701 = vmatprep.subr.mxu0 0.0
        %702 = vmatpush1.msra.mxu0 0.0
        %703 = vmatprep.mubr.f32.mxu0 0.0
        %v704 = vand.u32 %v209, 4294901760
        %705 = vmatmul.mubr.f32.gmra.mrb[0].mxu0 %v704
        %v706 = vpop.f32.mrb[0].mxu0
        %v707 = vadd.f32 %v628, %v706
        %v708 = vpop.f32.mrb[0].mxu0
        %709 = vmatprep.mubr.f32.mxu0 0.0
        %v710 = vand.u32 %v212, 4294901760
        %711 = vmatmul.mubr.f32.gmra.mrb[0].mxu0 %v710
        %v712 = vpop.f32.mrb[0].mxu0
        %v713 = vadd.f32 %v634, %v712
        %v714 = vpop.f32.mrb[0].mxu0
        %715 = vdwg.mxu0
        %v717 = vsel %vm207, %v197, 0
        %v720 = vsel %vm207, %v198, 0
        %722 = vmatprep.subr.mxu0 0.0
        %v723 = vand.u32 %v199, 4294901760
        %724 = vmatpush1.msra.mxu0 %v723
        %725 = vmatprep.subr.mxu0 0.0
        %v726 = vand.u32 %v200, 4294901760
        %727 = vmatpush1.msra.mxu0 %v726
        %728 = vmatprep.subr.mxu0 0.0
        %729 = vmatpush1.msra.mxu0 0.0
        %730 = vmatprep.subr.mxu0 0.0
        %731 = vmatpush1.msra.mxu0 0.0
        %732 = vmatprep.subr.mxu0 0.0
        %733 = vmatpush1.msra.mxu0 0.0
        %734 = vmatprep.subr.mxu0 0.0
        %735 = vmatpush1.msra.mxu0 0.0
        %736 = vmatprep.subr.mxu0 0.0
        %737 = vmatpush1.msra.mxu0 0.0
        %738 = vmatprep.subr.mxu0 0.0
        %739 = vmatpush1.msra.mxu0 0.0
        %740 = vmatprep.subr.mxu0 0.0
        %741 = vmatpush1.msra.mxu0 0.0
        %742 = vmatprep.subr.mxu0 0.0
        %743 = vmatpush1.msra.mxu0 0.0
        %744 = vmatprep.subr.mxu0 0.0
        %745 = vmatpush1.msra.mxu0 0.0
        %746 = vmatprep.subr.mxu0 0.0
        %747 = vmatpush1.msra.mxu0 0.0
        %748 = vmatprep.subr.mxu0 0.0
        %749 = vmatpush1.msra.mxu0 0.0
        %750 = vmatprep.subr.mxu0 0.0
        %751 = vmatpush1.msra.mxu0 0.0
        %752 = vmatprep.subr.mxu0 0.0
        %753 = vmatpush1.msra.mxu0 0.0
        %754 = vmatprep.subr.mxu0 0.0
        %755 = vmatpush1.msra.mxu0 0.0
        %756 = vmatprep.subr.mxu0 0.0
        %757 = vmatpush1.msra.mxu0 0.0
        %758 = vmatprep.subr.mxu0 0.0
        %759 = vmatpush1.msra.mxu0 0.0
        %760 = vmatprep.subr.mxu0 0.0
        %761 = vmatpush1.msra.mxu0 0.0
        %762 = vmatprep.subr.mxu0 0.0
        %763 = vmatpush1.msra.mxu0 0.0
        %764 = vmatprep.subr.mxu0 0.0
        %765 = vmatpush1.msra.mxu0 0.0
        %766 = vmatprep.subr.mxu0 0.0
        %767 = vmatpush1.msra.mxu0 0.0
        %768 = vmatprep.subr.mxu0 0.0
        %769 = vmatpush1.msra.mxu0 0.0
        %770 = vmatprep.subr.mxu0 0.0
        %771 = vmatpush1.msra.mxu0 0.0
        %772 = vmatprep.subr.mxu0 0.0
        %773 = vmatpush1.msra.mxu0 0.0
        %774 = vmatprep.subr.mxu0 0.0
        %775 = vmatpush1.msra.mxu0 0.0
        %776 = vmatprep.subr.mxu0 0.0
        %777 = vmatpush1.msra.mxu0 0.0
        %778 = vmatprep.subr.mxu0 0.0
        %779 = vmatpush1.msra.mxu0 0.0
        %780 = vmatprep.subr.mxu0 0.0
        %781 = vmatpush1.msra.mxu0 0.0
        %782 = vmatprep.subr.mxu0 0.0
        %783 = vmatpush1.msra.mxu0 0.0
        %784 = vmatprep.subr.mxu0 0.0
        %785 = vmatpush1.msra.mxu0 0.0
        %786 = vmatprep.subr.mxu0 0.0
        %787 = vmatpush1.msra.mxu0 0.0
        %788 = vmatprep.mubr.f32.mxu0 0.0
        %v789 = vand.u32 %v717, 4294901760
        %v790 = vsub.f32 %v717, %v789
        %v791 = vand.u32 %v790, 4294901760
        %v792 = vsub.f32 %v790, %v791
        %v793 = vand.u32 %v792, 4294901760
        %794 = vmatmul.mubr.f32.gmra.mrb[0].mxu0 %v793
        %v795 = vpop.f32.mrb[0].mxu0
        %v796 = vadd.f32 %v707, %v795
        %v797 = vpop.f32.mrb[0].mxu0
        %798 = vmatprep.mubr.f32.mxu0 0.0
        %v799 = vand.u32 %v720, 4294901760
        %v800 = vsub.f32 %v720, %v799
        %v801 = vand.u32 %v800, 4294901760
        %v802 = vsub.f32 %v800, %v801
        %v803 = vand.u32 %v802, 4294901760
        %804 = vmatmul.mubr.f32.gmra.mrb[0].mxu0 %v803
        %v805 = vpop.f32.mrb[0].mxu0
        %v806 = vadd.f32 %v713, %v805
        %v807 = vpop.f32.mrb[0].mxu0
        %808 = vdwg.mxu0
        %809 = vmatprep.subr.mxu0 0.0
        %v810 = vand.u32 %v199, 4294901760
        %v811 = vsub.f32 %v199, %v810
        %v812 = vand.u32 %v811, 4294901760
        %v813 = vsub.f32 %v811, %v812
        %v814 = vand.u32 %v813, 4294901760
        %815 = vmatpush1.msra.mxu0 %v814
        %816 = vmatprep.subr.mxu0 0.0
        %v817 = vand.u32 %v200, 4294901760
        %v818 = vsub.f32 %v200, %v817
        %v819 = vand.u32 %v818, 4294901760
        %v820 = vsub.f32 %v818, %v819
        %v821 = vand.u32 %v820, 4294901760
        %822 = vmatpush1.msra.mxu0 %v821
        %823 = vmatprep.subr.mxu0 0.0
        %824 = vmatpush1.msra.mxu0 0.0
        %825 = vmatprep.subr.mxu0 0.0
        %826 = vmatpush1.msra.mxu0 0.0
        %827 = vmatprep.subr.mxu0 0.0
        %828 = vmatpush1.msra.mxu0 0.0
        %829 = vmatprep.subr.mxu0 0.0
        %830 = vmatpush1.msra.mxu0 0.0
        %831 = vmatprep.subr.mxu0 0.0
        %832 = vmatpush1.msra.mxu0 0.0
        %833 = vmatprep.subr.mxu0 0.0
        %834 = vmatpush1.msra.mxu0 0.0
        %835 = vmatprep.subr.mxu0 0.0
        %836 = vmatpush1.msra.mxu0 0.0
        %837 = vmatprep.subr.mxu0 0.0
        %838 = vmatpush1.msra.mxu0 0.0
        %839 = vmatprep.subr.mxu0 0.0
        %840 = vmatpush1.msra.mxu0 0.0
        %841 = vmatprep.subr.mxu0 0.0
        %842 = vmatpush1.msra.mxu0 0.0
        %843 = vmatprep.subr.mxu0 0.0
        %844 = vmatpush1.msra.mxu0 0.0
        %845 = vmatprep.subr.mxu0 0.0
        %846 = vmatpush1.msra.mxu0 0.0
        %847 = vmatprep.subr.mxu0 0.0
        %848 = vmatpush1.msra.mxu0 0.0
        %849 = vmatprep.subr.mxu0 0.0
        %850 = vmatpush1.msra.mxu0 0.0
        %851 = vmatprep.subr.mxu0 0.0
        %852 = vmatpush1.msra.mxu0 0.0
        %853 = vmatprep.subr.mxu0 0.0
        %854 = vmatpush1.msra.mxu0 0.0
        %855 = vmatprep.subr.mxu0 0.0
        %856 = vmatpush1.msra.mxu0 0.0
        %857 = vmatprep.subr.mxu0 0.0
        %858 = vmatpush1.msra.mxu0 0.0
        %859 = vmatprep.subr.mxu0 0.0
        %860 = vmatpush1.msra.mxu0 0.0
        %861 = vmatprep.subr.mxu0 0.0
        %862 = vmatpush1.msra.mxu0 0.0
        %863 = vmatprep.subr.mxu0 0.0
        %864 = vmatpush1.msra.mxu0 0.0
        %865 = vmatprep.subr.mxu0 0.0
        %866 = vmatpush1.msra.mxu0 0.0
        %867 = vmatprep.subr.mxu0 0.0
        %868 = vmatpush1.msra.mxu0 0.0
        %869 = vmatprep.subr.mxu0 0.0
        %870 = vmatpush1.msra.mxu0 0.0
        %871 = vmatprep.subr.mxu0 0.0
        %872 = vmatpush1.msra.mxu0 0.0
        %873 = vmatprep.subr.mxu0 0.0
        %874 = vmatpush1.msra.mxu0 0.0
        %875 = vmatprep.subr.mxu0 0.0
        %876 = vmatpush1.msra.mxu0 0.0
        %877 = vmatprep.subr.mxu0 0.0
        %878 = vmatpush1.msra.mxu0 0.0
        %879 = vmatprep.subr.mxu0 0.0
        %880 = vmatpush1.msra.mxu0 0.0
        %881 = vmatprep.subr.mxu0 0.0
        %882 = vmatpush1.msra.mxu0 0.0
        %883 = vmatprep.mubr.f32.mxu0 0.0
        %v884 = vand.u32 %v717, 4294901760
        %885 = vmatmul.mubr.f32.gmra.mrb[0].mxu0 %v884
        %v886 = vpop.f32.mrb[0].mxu0
        %v887 = vadd.f32 %v796, %v886
        %v888 = vpop.f32.mrb[0].mxu0
        %889 = vmatprep.mubr.f32.mxu0 0.0
        %v890 = vand.u32 %v720, 4294901760
        %891 = vmatmul.mubr.f32.gmra.mrb[0].mxu0 %v890
        %v892 = vpop.f32.mrb[0].mxu0
        %v893 = vadd.f32 %v806, %v892
        %v894 = vpop.f32.mrb[0].mxu0
        %895 = vdwg.mxu0
        %896 = vmatprep.subr.mxu0 0.0
        %v897 = vand.u32 %v199, 4294901760
        %v898 = vsub.f32 %v199, %v897
        %899 = vmatpush1.msra.mxu0 %v898
        %900 = vmatprep.subr.mxu0 0.0
        %v901 = vand.u32 %v200, 4294901760
        %v902 = vsub.f32 %v200, %v901
        %903 = vmatpush1.msra.mxu0 %v902
        %904 = vmatprep.subr.mxu0 0.0
        %905 = vmatpush1.msra.mxu0 0.0
        %906 = vmatprep.subr.mxu0 0.0
        %907 = vmatpush1.msra.mxu0 0.0
        %908 = vmatprep.subr.mxu0 0.0
        %909 = vmatpush1.msra.mxu0 0.0
        %910 = vmatprep.subr.mxu0 0.0
        %911 = vmatpush1.msra.mxu0 0.0
        %912 = vmatprep.subr.mxu0 0.0
        %913 = vmatpush1.msra.mxu0 0.0
        %914 = vmatprep.subr.mxu0 0.0
        %915 = vmatpush1.msra.mxu0 0.0
        %916 = vmatprep.subr.mxu0 0.0
        %917 = vmatpush1.msra.mxu0 0.0
        %918 = vmatprep.subr.mxu0 0.0
        %919 = vmatpush1.msra.mxu0 0.0
        %920 = vmatprep.subr.mxu0 0.0
        %921 = vmatpush1.msra.mxu0 0.0
        %922 = vmatprep.subr.mxu0 0.0
        %923 = vmatpush1.msra.mxu0 0.0
        %924 = vmatprep.subr.mxu0 0.0
        %925 = vmatpush1.msra.mxu0 0.0
        %926 = vmatprep.subr.mxu0 0.0
        %927 = vmatpush1.msra.mxu0 0.0
        %928 = vmatprep.subr.mxu0 0.0
        %929 = vmatpush1.msra.mxu0 0.0
        %930 = vmatprep.subr.mxu0 0.0
        %931 = vmatpush1.msra.mxu0 0.0
        %932 = vmatprep.subr.mxu0 0.0
        %933 = vmatpush1.msra.mxu0 0.0
        %934 = vmatprep.subr.mxu0 0.0
        %935 = vmatpush1.msra.mxu0 0.0
        %936 = vmatprep.subr.mxu0 0.0
        %937 = vmatpush1.msra.mxu0 0.0
        %938 = vmatprep.subr.mxu0 0.0
        %939 = vmatpush1.msra.mxu0 0.0
        %940 = vmatprep.subr.mxu0 0.0
        %941 = vmatpush1.msra.mxu0 0.0
        %942 = vmatprep.subr.mxu0 0.0
        %943 = vmatpush1.msra.mxu0 0.0
        %944 = vmatprep.subr.mxu0 0.0
        %945 = vmatpush1.msra.mxu0 0.0
        %946 = vmatprep.subr.mxu0 0.0
        %947 = vmatpush1.msra.mxu0 0.0
        %948 = vmatprep.subr.mxu0 0.0
        %949 = vmatpush1.msra.mxu0 0.0
        %950 = vmatprep.subr.mxu0 0.0
        %951 = vmatpush1.msra.mxu0 0.0
        %952 = vmatprep.subr.mxu0 0.0
        %953 = vmatpush1.msra.mxu0 0.0
        %954 = vmatprep.subr.mxu0 0.0
        %955 = vmatpush1.msra.mxu0 0.0
        %956 = vmatprep.subr.mxu0 0.0
        %957 = vmatpush1.msra.mxu0 0.0
        %958 = vmatprep.subr.mxu0 0.0
        %959 = vmatpush1.msra.mxu0 0.0
        %960 = vmatprep.subr.mxu0 0.0
        %961 = vmatpush1.msra.mxu0 0.0
        %962 = vmatprep.subr.mxu0 0.0
        %963 = vmatpush1.msra.mxu0 0.0
        %964 = vmatprep.mubr.f32.mxu0 0.0
        %v965 = vand.u32 %v717, 4294901760
        %v966 = vsub.f32 %v717, %v965
        %967 = vmatmul.mubr.f32.gmra.mrb[0].mxu0 %v966
        %v968 = vpop.f32.mrb[0].mxu0
        %v969 = vadd.f32 %v887, %v968
        %v970 = vpop.f32.mrb[0].mxu0
        %971 = vmatprep.mubr.f32.mxu0 0.0
        %v972 = vand.u32 %v720, 4294901760
        %v973 = vsub.f32 %v720, %v972
        %974 = vmatmul.mubr.f32.gmra.mrb[0].mxu0 %v973
        %v975 = vpop.f32.mrb[0].mxu0
        %v976 = vadd.f32 %v893, %v975
        %v977 = vpop.f32.mrb[0].mxu0
        %978 = vdwg.mxu0
        %979 = vmatprep.subr.mxu0 0.0
        %v980 = vand.u32 %v199, 4294901760
        %981 = vmatpush1.msra.mxu0 %v980
        %982 = vmatprep.subr.mxu0 0.0
        %v983 = vand.u32 %v200, 4294901760
        %984 = vmatpush1.msra.mxu0 %v983
        %985 = vmatprep.subr.mxu0 0.0
        %986 = vmatpush1.msra.mxu0 0.0
        %987 = vmatprep.subr.mxu0 0.0
        %988 = vmatpush1.msra.mxu0 0.0
        %989 = vmatprep.subr.mxu0 0.0
        %990 = vmatpush1.msra.mxu0 0.0
        %991 = vmatprep.subr.mxu0 0.0
        %992 = vmatpush1.msra.mxu0 0.0
        %993 = vmatprep.subr.mxu0 0.0
        %994 = vmatpush1.msra.mxu0 0.0
        %995 = vmatprep.subr.mxu0 0.0
        %996 = vmatpush1.msra.mxu0 0.0
        %997 = vmatprep.subr.mxu0 0.0
        %998 = vmatpush1.msra.mxu0 0.0
        %999 = vmatprep.subr.mxu0 0.0
        %1000 = vmatpush1.msra.mxu0 0.0
        %1001 = vmatprep.subr.mxu0 0.0
        %1002 = vmatpush1.msra.mxu0 0.0
        %1003 = vmatprep.subr.mxu0 0.0
        %1004 = vmatpush1.msra.mxu0 0.0
        %1005 = vmatprep.subr.mxu0 0.0
        %1006 = vmatpush1.msra.mxu0 0.0
        %1007 = vmatprep.subr.mxu0 0.0
        %1008 = vmatpush1.msra.mxu0 0.0
        %1009 = vmatprep.subr.mxu0 0.0
        %1010 = vmatpush1.msra.mxu0 0.0
        %1011 = vmatprep.subr.mxu0 0.0
        %1012 = vmatpush1.msra.mxu0 0.0
        %1013 = vmatprep.subr.mxu0 0.0
        %1014 = vmatpush1.msra.mxu0 0.0
        %1015 = vmatprep.subr.mxu0 0.0
        %1016 = vmatpush1.msra.mxu0 0.0
        %1017 = vmatprep.subr.mxu0 0.0
        %1018 = vmatpush1.msra.mxu0 0.0
        %1019 = vmatprep.subr.mxu0 0.0
        %1020 = vmatpush1.msra.mxu0 0.0
        %1021 = vmatprep.subr.mxu0 0.0
        %1022 = vmatpush1.msra.mxu0 0.0
        %1023 = vmatprep.subr.mxu0 0.0
        %1024 = vmatpush1.msra.mxu0 0.0
        %1025 = vmatprep.subr.mxu0 0.0
        %1026 = vmatpush1.msra.mxu0 0.0
        %1027 = vmatprep.subr.mxu0 0.0
        %1028 = vmatpush1.msra.mxu0 0.0
        %1029 = vmatprep.subr.mxu0 0.0
        %1030 = vmatpush1.msra.mxu0 0.0
        %1031 = vmatprep.subr.mxu0 0.0
        %1032 = vmatpush1.msra.mxu0 0.0
        %1033 = vmatprep.subr.mxu0 0.0
        %1034 = vmatpush1.msra.mxu0 0.0
        %1035 = vmatprep.subr.mxu0 0.0
        %1036 = vmatpush1.msra.mxu0 0.0
        %1037 = vmatprep.subr.mxu0 0.0
        %1038 = vmatpush1.msra.mxu0 0.0
        %1039 = vmatprep.subr.mxu0 0.0
        %1040 = vmatpush1.msra.mxu0 0.0
        %1041 = vmatprep.subr.mxu0 0.0
        %1042 = vmatpush1.msra.mxu0 0.0
        %1043 = vmatprep.subr.mxu0 0.0
        %1044 = vmatpush1.msra.mxu0 0.0
        %1045 = vmatprep.mubr.f32.mxu0 0.0
        %v1046 = vand.u32 %v717, 4294901760
        %v1047 = vsub.f32 %v717, %v1046
        %v1048 = vand.u32 %v1047, 4294901760
        %1049 = vmatmul.mubr.f32.gmra.mrb[0].mxu0 %v1048
        %v1050 = vpop.f32.mrb[0].mxu0
        %v1051 = vadd.f32 %v969, %v1050
        %v1052 = vpop.f32.mrb[0].mxu0
        %1053 = vmatprep.mubr.f32.mxu0 0.0
        %v1054 = vand.u32 %v720, 4294901760
        %v1055 = vsub.f32 %v720, %v1054
        %v1056 = vand.u32 %v1055, 4294901760
        %1057 = vmatmul.mubr.f32.gmra.mrb[0].mxu0 %v1056
        %v1058 = vpop.f32.mrb[0].mxu0
        %v1059 = vadd.f32 %v976, %v1058
        %v1060 = vpop.f32.mrb[0].mxu0
        %1061 = vdwg.mxu0
        %1062 = vmatprep.subr.mxu0 0.0
        %v1063 = vand.u32 %v199, 4294901760
        %v1064 = vsub.f32 %v199, %v1063
        %v1065 = vand.u32 %v1064, 4294901760
        %1066 = vmatpush1.msra.mxu0 %v1065
        %1067 = vmatprep.subr.mxu0 0.0
        %v1068 = vand.u32 %v200, 4294901760
        %v1069 = vsub.f32 %v200, %v1068
        %v1070 = vand.u32 %v1069, 4294901760
        %1071 = vmatpush1.msra.mxu0 %v1070
        %1072 = vmatprep.subr.mxu0 0.0
        %1073 = vmatpush1.msra.mxu0 0.0
        %1074 = vmatprep.subr.mxu0 0.0
        %1075 = vmatpush1.msra.mxu0 0.0
        %1076 = vmatprep.subr.mxu0 0.0
        %1077 = vmatpush1.msra.mxu0 0.0
        %1078 = vmatprep.subr.mxu0 0.0
        %1079 = vmatpush1.msra.mxu0 0.0
        %1080 = vmatprep.subr.mxu0 0.0
        %1081 = vmatpush1.msra.mxu0 0.0
        %1082 = vmatprep.subr.mxu0 0.0
        %1083 = vmatpush1.msra.mxu0 0.0
        %1084 = vmatprep.subr.mxu0 0.0
        %1085 = vmatpush1.msra.mxu0 0.0
        %1086 = vmatprep.subr.mxu0 0.0
        %1087 = vmatpush1.msra.mxu0 0.0
        %1088 = vmatprep.subr.mxu0 0.0
        %1089 = vmatpush1.msra.mxu0 0.0
        %1090 = vmatprep.subr.mxu0 0.0
        %1091 = vmatpush1.msra.mxu0 0.0
        %1092 = vmatprep.subr.mxu0 0.0
        %1093 = vmatpush1.msra.mxu0 0.0
        %1094 = vmatprep.subr.mxu0 0.0
        %1095 = vmatpush1.msra.mxu0 0.0
        %1096 = vmatprep.subr.mxu0 0.0
        %1097 = vmatpush1.msra.mxu0 0.0
        %1098 = vmatprep.subr.mxu0 0.0
        %1099 = vmatpush1.msra.mxu0 0.0
        %1100 = vmatprep.subr.mxu0 0.0
        %1101 = vmatpush1.msra.mxu0 0.0
        %1102 = vmatprep.subr.mxu0 0.0
        %1103 = vmatpush1.msra.mxu0 0.0
        %1104 = vmatprep.subr.mxu0 0.0
        %1105 = vmatpush1.msra.mxu0 0.0
        %1106 = vmatprep.subr.mxu0 0.0
        %1107 = vmatpush1.msra.mxu0 0.0
        %1108 = vmatprep.subr.mxu0 0.0
        %1109 = vmatpush1.msra.mxu0 0.0
        %1110 = vmatprep.subr.mxu0 0.0
        %1111 = vmatpush1.msra.mxu0 0.0
        %1112 = vmatprep.subr.mxu0 0.0
        %1113 = vmatpush1.msra.mxu0 0.0
        %1114 = vmatprep.subr.mxu0 0.0
        %1115 = vmatpush1.msra.mxu0 0.0
        %1116 = vmatprep.subr.mxu0 0.0
        %1117 = vmatpush1.msra.mxu0 0.0
        %1118 = vmatprep.subr.mxu0 0.0
        %1119 = vmatpush1.msra.mxu0 0.0
        %1120 = vmatprep.subr.mxu0 0.0
        %1121 = vmatpush1.msra.mxu0 0.0
        %1122 = vmatprep.subr.mxu0 0.0
        %1123 = vmatpush1.msra.mxu0 0.0
        %1124 = vmatprep.subr.mxu0 0.0
        %1125 = vmatpush1.msra.mxu0 0.0
        %1126 = vmatprep.subr.mxu0 0.0
        %1127 = vmatpush1.msra.mxu0 0.0
        %1128 = vmatprep.subr.mxu0 0.0
        %1129 = vmatpush1.msra.mxu0 0.0
        %1130 = vmatprep.subr.mxu0 0.0
        %1131 = vmatpush1.msra.mxu0 0.0
        %1132 = vmatprep.mubr.f32.mxu0 0.0
        %v1133 = vand.u32 %v717, 4294901760
        %1134 = vmatmul.mubr.f32.gmra.mrb[0].mxu0 %v1133
        %v1135 = vpop.f32.mrb[0].mxu0
        %v1136 = vadd.f32 %v1051, %v1135
        %v1137 = vpop.f32.mrb[0].mxu0
        %1138 = vmatprep.mubr.f32.mxu0 0.0
        %v1139 = vand.u32 %v720, 4294901760
        %1140 = vmatmul.mubr.f32.gmra.mrb[0].mxu0 %v1139
        %v1141 = vpop.f32.mrb[0].mxu0
        %v1142 = vadd.f32 %v1059, %v1141
        %v1143 = vpop.f32.mrb[0].mxu0
        %1144 = vdwg.mxu0
        %1145 = vmatprep.subr.mxu0 0.0
        %v1146 = vand.u32 %v199, 4294901760
        %1147 = vmatpush1.msra.mxu0 %v1146
        %1148 = vmatprep.subr.mxu0 0.0
        %v1149 = vand.u32 %v200, 4294901760
        %1150 = vmatpush1.msra.mxu0 %v1149
        %1151 = vmatprep.subr.mxu0 0.0
        %1152 = vmatpush1.msra.mxu0 0.0
        %1153 = vmatprep.subr.mxu0 0.0
        %1154 = vmatpush1.msra.mxu0 0.0
        %1155 = vmatprep.subr.mxu0 0.0
        %1156 = vmatpush1.msra.mxu0 0.0
        %1157 = vmatprep.subr.mxu0 0.0
        %1158 = vmatpush1.msra.mxu0 0.0
        %1159 = vmatprep.subr.mxu0 0.0
        %1160 = vmatpush1.msra.mxu0 0.0
        %1161 = vmatprep.subr.mxu0 0.0
        %1162 = vmatpush1.msra.mxu0 0.0
        %1163 = vmatprep.subr.mxu0 0.0
        %1164 = vmatpush1.msra.mxu0 0.0
        %1165 = vmatprep.subr.mxu0 0.0
        %1166 = vmatpush1.msra.mxu0 0.0
        %1167 = vmatprep.subr.mxu0 0.0
        %1168 = vmatpush1.msra.mxu0 0.0
        %1169 = vmatprep.subr.mxu0 0.0
        %1170 = vmatpush1.msra.mxu0 0.0
        %1171 = vmatprep.subr.mxu0 0.0
        %1172 = vmatpush1.msra.mxu0 0.0
        %1173 = vmatprep.subr.mxu0 0.0
        %1174 = vmatpush1.msra.mxu0 0.0
        %1175 = vmatprep.subr.mxu0 0.0
        %1176 = vmatpush1.msra.mxu0 0.0
        %1177 = vmatprep.subr.mxu0 0.0
        %1178 = vmatpush1.msra.mxu0 0.0
        %1179 = vmatprep.subr.mxu0 0.0
        %1180 = vmatpush1.msra.mxu0 0.0
        %1181 = vmatprep.subr.mxu0 0.0
        %1182 = vmatpush1.msra.mxu0 0.0
        %1183 = vmatprep.subr.mxu0 0.0
        %1184 = vmatpush1.msra.mxu0 0.0
        %1185 = vmatprep.subr.mxu0 0.0
        %1186 = vmatpush1.msra.mxu0 0.0
        %1187 = vmatprep.subr.mxu0 0.0
        %1188 = vmatpush1.msra.mxu0 0.0
        %1189 = vmatprep.subr.mxu0 0.0
        %1190 = vmatpush1.msra.mxu0 0.0
        %1191 = vmatprep.subr.mxu0 0.0
        %1192 = vmatpush1.msra.mxu0 0.0
        %1193 = vmatprep.subr.mxu0 0.0
        %1194 = vmatpush1.msra.mxu0 0.0
        %1195 = vmatprep.subr.mxu0 0.0
        %1196 = vmatpush1.msra.mxu0 0.0
        %1197 = vmatprep.subr.mxu0 0.0
        %1198 = vmatpush1.msra.mxu0 0.0
        %1199 = vmatprep.subr.mxu0 0.0
        %1200 = vmatpush1.msra.mxu0 0.0
        %1201 = vmatprep.subr.mxu0 0.0
        %1202 = vmatpush1.msra.mxu0 0.0
        %1203 = vmatprep.subr.mxu0 0.0
        %1204 = vmatpush1.msra.mxu0 0.0
        %1205 = vmatprep.subr.mxu0 0.0
        %1206 = vmatpush1.msra.mxu0 0.0
        %1207 = vmatprep.subr.mxu0 0.0
        %1208 = vmatpush1.msra.mxu0 0.0
        %1209 = vmatprep.subr.mxu0 0.0
        %1210 = vmatpush1.msra.mxu0 0.0
        %1211 = vmatprep.mubr.f32.mxu0 0.0
        %v1212 = vand.u32 %v717, 4294901760
        %1213 = vmatmul.mubr.f32.gmra.mrb[0].mxu0 %v1212
        %v1214 = vpop.f32.mrb[0].mxu0
        %v1215 = vadd.f32 %v1136, %v1214
        %v1216 = vpop.f32.mrb[0].mxu0
        %1217 = vmatprep.mubr.f32.mxu0 0.0
        %v1218 = vand.u32 %v720, 4294901760
        %1219 = vmatmul.mubr.f32.gmra.mrb[0].mxu0 %v1218
        %v1220 = vpop.f32.mrb[0].mxu0
        %v1221 = vadd.f32 %v1142, %v1220
        %v1222 = vpop.f32.mrb[0].mxu0
        %1223 = vdwg.mxu0
        %s1224 = scalar_lea.vmem %s170, 32 [#allocation2]
        %v1225 = vld [vmem:[%s1224] sm:$0xff]
        %v1226 = vld [vmem:[%s1224 + $0x8] sm:$0xff]
        %s1227 = scalar_lea.vmem [#allocation5], 32
        %v1228 = vld [vmem:[%s1227] sm:$0xff]
        %v1229 = vld [vmem:[%s1227 + $0x8] sm:$0xff]
        %v1231 = vsel %vm207, %v1225, 0
        %v1234 = vsel %vm207, %v1226, 0
        %1236 = vmatprep.subr.mxu0 0.0
        %v1237 = vand.u32 %v1228, 4294901760
        %1238 = vmatpush1.msra.mxu0 %v1237
        %1239 = vmatprep.subr.mxu0 0.0
        %v1240 = vand.u32 %v1229, 4294901760
        %1241 = vmatpush1.msra.mxu0 %v1240
        %1242 = vmatprep.subr.mxu0 0.0
        %1243 = vmatpush1.msra.mxu0 0.0
        %1244 = vmatprep.subr.mxu0 0.0
        %1245 = vmatpush1.msra.mxu0 0.0
        %1246 = vmatprep.subr.mxu0 0.0
        %1247 = vmatpush1.msra.mxu0 0.0
        %1248 = vmatprep.subr.mxu0 0.0
        %1249 = vmatpush1.msra.mxu0 0.0
        %1250 = vmatprep.subr.mxu0 0.0
        %1251 = vmatpush1.msra.mxu0 0.0
        %1252 = vmatprep.subr.mxu0 0.0
        %1253 = vmatpush1.msra.mxu0 0.0
        %1254 = vmatprep.subr.mxu0 0.0
        %1255 = vmatpush1.msra.mxu0 0.0
        %1256 = vmatprep.subr.mxu0 0.0
        %1257 = vmatpush1.msra.mxu0 0.0
        %1258 = vmatprep.subr.mxu0 0.0
        %1259 = vmatpush1.msra.mxu0 0.0
        %1260 = vmatprep.subr.mxu0 0.0
        %1261 = vmatpush1.msra.mxu0 0.0
        %1262 = vmatprep.subr.mxu0 0.0
        %1263 = vmatpush1.msra.mxu0 0.0
        %1264 = vmatprep.subr.mxu0 0.0
        %1265 = vmatpush1.msra.mxu0 0.0
        %1266 = vmatprep.subr.mxu0 0.0
        %1267 = vmatpush1.msra.mxu0 0.0
        %1268 = vmatprep.subr.mxu0 0.0
        %1269 = vmatpush1.msra.mxu0 0.0
        %1270 = vmatprep.subr.mxu0 0.0
        %1271 = vmatpush1.msra.mxu0 0.0
        %1272 = vmatprep.subr.mxu0 0.0
        %1273 = vmatpush1.msra.mxu0 0.0
        %1274 = vmatprep.subr.mxu0 0.0
        %1275 = vmatpush1.msra.mxu0 0.0
        %1276 = vmatprep.subr.mxu0 0.0
        %1277 = vmatpush1.msra.mxu0 0.0
        %1278 = vmatprep.subr.mxu0 0.0
        %1279 = vmatpush1.msra.mxu0 0.0
        %1280 = vmatprep.subr.mxu0 0.0
        %1281 = vmatpush1.msra.mxu0 0.0
        %1282 = vmatprep.subr.mxu0 0.0
        %1283 = vmatpush1.msra.mxu0 0.0
        %1284 = vmatprep.subr.mxu0 0.0
        %1285 = vmatpush1.msra.mxu0 0.0
        %1286 = vmatprep.subr.mxu0 0.0
        %1287 = vmatpush1.msra.mxu0 0.0
        %1288 = vmatprep.subr.mxu0 0.0
        %1289 = vmatpush1.msra.mxu0 0.0
        %1290 = vmatprep.subr.mxu0 0.0
        %1291 = vmatpush1.msra.mxu0 0.0
        %1292 = vmatprep.subr.mxu0 0.0
        %1293 = vmatpush1.msra.mxu0 0.0
        %1294 = vmatprep.subr.mxu0 0.0
        %1295 = vmatpush1.msra.mxu0 0.0
        %1296 = vmatprep.subr.mxu0 0.0
        %1297 = vmatpush1.msra.mxu0 0.0
        %1298 = vmatprep.subr.mxu0 0.0
        %1299 = vmatpush1.msra.mxu0 0.0
        %1300 = vmatprep.subr.mxu0 0.0
        %1301 = vmatpush1.msra.mxu0 0.0
        %1302 = vmatprep.mubr.f32.mxu0 0.0
        %v1303 = vand.u32 %v1231, 4294901760
        %v1304 = vsub.f32 %v1231, %v1303
        %v1305 = vand.u32 %v1304, 4294901760
        %v1306 = vsub.f32 %v1304, %v1305
        %v1307 = vand.u32 %v1306, 4294901760
        %1308 = vmatmul.mubr.f32.gmra.mrb[0].mxu0 %v1307
        %v1309 = vpop.f32.mrb[0].mxu0
        %v1310 = vadd.f32 0.0, %v1309
        %v1311 = vpop.f32.mrb[0].mxu0
        %1312 = vmatprep.mubr.f32.mxu0 0.0
        %v1313 = vand.u32 %v1234, 4294901760
        %v1314 = vsub.f32 %v1234, %v1313
        %v1315 = vand.u32 %v1314, 4294901760
        %v1316 = vsub.f32 %v1314, %v1315
        %v1317 = vand.u32 %v1316, 4294901760
        %1318 = vmatmul.mubr.f32.gmra.mrb[0].mxu0 %v1317
        %v1319 = vpop.f32.mrb[0].mxu0
        %v1320 = vadd.f32 0.0, %v1319
        %v1321 = vpop.f32.mrb[0].mxu0
        %1322 = vdwg.mxu0
        %1323 = vmatprep.subr.mxu0 0.0
        %v1324 = vand.u32 %v1228, 4294901760
        %v1325 = vsub.f32 %v1228, %v1324
        %v1326 = vand.u32 %v1325, 4294901760
        %v1327 = vsub.f32 %v1325, %v1326
        %v1328 = vand.u32 %v1327, 4294901760
        %1329 = vmatpush1.msra.mxu0 %v1328
        %1330 = vmatprep.subr.mxu0 0.0
        %v1331 = vand.u32 %v1229, 4294901760
        %v1332 = vsub.f32 %v1229, %v1331
        %v1333 = vand.u32 %v1332, 4294901760
        %v1334 = vsub.f32 %v1332, %v1333
        %v1335 = vand.u32 %v1334, 4294901760
        %1336 = vmatpush1.msra.mxu0 %v1335
        %1337 = vmatprep.subr.mxu0 0.0
        %1338 = vmatpush1.msra.mxu0 0.0
        %1339 = vmatprep.subr.mxu0 0.0
        %1340 = vmatpush1.msra.mxu0 0.0
        %1341 = vmatprep.subr.mxu0 0.0
        %1342 = vmatpush1.msra.mxu0 0.0
        %1343 = vmatprep.subr.mxu0 0.0
        %1344 = vmatpush1.msra.mxu0 0.0
        %1345 = vmatprep.subr.mxu0 0.0
        %1346 = vmatpush1.msra.mxu0 0.0
        %1347 = vmatprep.subr.mxu0 0.0
        %1348 = vmatpush1.msra.mxu0 0.0
        %1349 = vmatprep.subr.mxu0 0.0
        %1350 = vmatpush1.msra.mxu0 0.0
        %1351 = vmatprep.subr.mxu0 0.0
        %1352 = vmatpush1.msra.mxu0 0.0
        %1353 = vmatprep.subr.mxu0 0.0
        %1354 = vmatpush1.msra.mxu0 0.0
        %1355 = vmatprep.subr.mxu0 0.0
        %1356 = vmatpush1.msra.mxu0 0.0
        %1357 = vmatprep.subr.mxu0 0.0
        %1358 = vmatpush1.msra.mxu0 0.0
        %1359 = vmatprep.subr.mxu0 0.0
        %1360 = vmatpush1.msra.mxu0 0.0
        %1361 = vmatprep.subr.mxu0 0.0
        %1362 = vmatpush1.msra.mxu0 0.0
        %1363 = vmatprep.subr.mxu0 0.0
        %1364 = vmatpush1.msra.mxu0 0.0
        %1365 = vmatprep.subr.mxu0 0.0
        %1366 = vmatpush1.msra.mxu0 0.0
        %1367 = vmatprep.subr.mxu0 0.0
        %1368 = vmatpush1.msra.mxu0 0.0
        %1369 = vmatprep.subr.mxu0 0.0
        %1370 = vmatpush1.msra.mxu0 0.0
        %1371 = vmatprep.subr.mxu0 0.0
        %1372 = vmatpush1.msra.mxu0 0.0
        %1373 = vmatprep.subr.mxu0 0.0
        %1374 = vmatpush1.msra.mxu0 0.0
        %1375 = vmatprep.subr.mxu0 0.0
        %1376 = vmatpush1.msra.mxu0 0.0
        %1377 = vmatprep.subr.mxu0 0.0
        %1378 = vmatpush1.msra.mxu0 0.0
        %1379 = vmatprep.subr.mxu0 0.0
        %1380 = vmatpush1.msra.mxu0 0.0
        %1381 = vmatprep.subr.mxu0 0.0
        %1382 = vmatpush1.msra.mxu0 0.0
        %1383 = vmatprep.subr.mxu0 0.0
        %1384 = vmatpush1.msra.mxu0 0.0
        %1385 = vmatprep.subr.mxu0 0.0
        %1386 = vmatpush1.msra.mxu0 0.0
        %1387 = vmatprep.subr.mxu0 0.0
        %1388 = vmatpush1.msra.mxu0 0.0
        %1389 = vmatprep.subr.mxu0 0.0
        %1390 = vmatpush1.msra.mxu0 0.0
        %1391 = vmatprep.subr.mxu0 0.0
        %1392 = vmatpush1.msra.mxu0 0.0
        %1393 = vmatprep.subr.mxu0 0.0
        %1394 = vmatpush1.msra.mxu0 0.0
        %1395 = vmatprep.subr.mxu0 0.0
        %1396 = vmatpush1.msra.mxu0 0.0
        %1397 = vmatprep.mubr.f32.mxu0 0.0
        %v1398 = vand.u32 %v1231, 4294901760
        %1399 = vmatmul.mubr.f32.gmra.mrb[0].mxu0 %v1398
        %v1400 = vpop.f32.mrb[0].mxu0
        %v1401 = vadd.f32 %v1310, %v1400
        %v1402 = vpop.f32.mrb[0].mxu0
        %1403 = vmatprep.mubr.f32.mxu0 0.0
        %v1404 = vand.u32 %v1234, 4294901760
        %1405 = vmatmul.mubr.f32.gmra.mrb[0].mxu0 %v1404
        %v1406 = vpop.f32.mrb[0].mxu0
        %v1407 = vadd.f32 %v1320, %v1406
        %v1408 = vpop.f32.mrb[0].mxu0
        %1409 = vdwg.mxu0
        %1410 = vmatprep.subr.mxu0 0.0
        %v1411 = vand.u32 %v1228, 4294901760
        %v1412 = vsub.f32 %v1228, %v1411
        %1413 = vmatpush1.msra.mxu0 %v1412
        %1414 = vmatprep.subr.mxu0 0.0
        %v1415 = vand.u32 %v1229, 4294901760
        %v1416 = vsub.f32 %v1229, %v1415
        %1417 = vmatpush1.msra.mxu0 %v1416
        %1418 = vmatprep.subr.mxu0 0.0
        %1419 = vmatpush1.msra.mxu0 0.0
        %1420 = vmatprep.subr.mxu0 0.0
        %1421 = vmatpush1.msra.mxu0 0.0
        %1422 = vmatprep.subr.mxu0 0.0
        %1423 = vmatpush1.msra.mxu0 0.0
        %1424 = vmatprep.subr.mxu0 0.0
        %1425 = vmatpush1.msra.mxu0 0.0
        %1426 = vmatprep.subr.mxu0 0.0
        %1427 = vmatpush1.msra.mxu0 0.0
        %1428 = vmatprep.subr.mxu0 0.0
        %1429 = vmatpush1.msra.mxu0 0.0
        %1430 = vmatprep.subr.mxu0 0.0
        %1431 = vmatpush1.msra.mxu0 0.0
        %1432 = vmatprep.subr.mxu0 0.0
        %1433 = vmatpush1.msra.mxu0 0.0
        %1434 = vmatprep.subr.mxu0 0.0
        %1435 = vmatpush1.msra.mxu0 0.0
        %1436 = vmatprep.subr.mxu0 0.0
        %1437 = vmatpush1.msra.mxu0 0.0
        %1438 = vmatprep.subr.mxu0 0.0
        %1439 = vmatpush1.msra.mxu0 0.0
        %1440 = vmatprep.subr.mxu0 0.0
        %1441 = vmatpush1.msra.mxu0 0.0
        %1442 = vmatprep.subr.mxu0 0.0
        %1443 = vmatpush1.msra.mxu0 0.0
        %1444 = vmatprep.subr.mxu0 0.0
        %1445 = vmatpush1.msra.mxu0 0.0
        %1446 = vmatprep.subr.mxu0 0.0
        %1447 = vmatpush1.msra.mxu0 0.0
        %1448 = vmatprep.subr.mxu0 0.0
        %1449 = vmatpush1.msra.mxu0 0.0
        %1450 = vmatprep.subr.mxu0 0.0
        %1451 = vmatpush1.msra.mxu0 0.0
        %1452 = vmatprep.subr.mxu0 0.0
        %1453 = vmatpush1.msra.mxu0 0.0
        %1454 = vmatprep.subr.mxu0 0.0
        %1455 = vmatpush1.msra.mxu0 0.0
        %1456 = vmatprep.subr.mxu0 0.0
        %1457 = vmatpush1.msra.mxu0 0.0
        %1458 = vmatprep.subr.mxu0 0.0
        %1459 = vmatpush1.msra.mxu0 0.0
        %1460 = vmatprep.subr.mxu0 0.0
        %1461 = vmatpush1.msra.mxu0 0.0
        %1462 = vmatprep.subr.mxu0 0.0
        %1463 = vmatpush1.msra.mxu0 0.0
        %1464 = vmatprep.subr.mxu0 0.0
        %1465 = vmatpush1.msra.mxu0 0.0
        %1466 = vmatprep.subr.mxu0 0.0
        %1467 = vmatpush1.msra.mxu0 0.0
        %1468 = vmatprep.subr.mxu0 0.0
        %1469 = vmatpush1.msra.mxu0 0.0
        %1470 = vmatprep.subr.mxu0 0.0
        %1471 = vmatpush1.msra.mxu0 0.0
        %1472 = vmatprep.subr.mxu0 0.0
        %1473 = vmatpush1.msra.mxu0 0.0
        %1474 = vmatprep.subr.mxu0 0.0
        %1475 = vmatpush1.msra.mxu0 0.0
        %1476 = vmatprep.subr.mxu0 0.0
        %1477 = vmatpush1.msra.mxu0 0.0
        %1478 = vmatprep.mubr.f32.mxu0 0.0
        %v1479 = vand.u32 %v1231, 4294901760
        %v1480 = vsub.f32 %v1231, %v1479
        %1481 = vmatmul.mubr.f32.gmra.mrb[0].mxu0 %v1480
        %v1482 = vpop.f32.mrb[0].mxu0
        %v1483 = vadd.f32 %v1401, %v1482
        %v1484 = vpop.f32.mrb[0].mxu0
        %1485 = vmatprep.mubr.f32.mxu0 0.0
        %v1486 = vand.u32 %v1234, 4294901760
        %v1487 = vsub.f32 %v1234, %v1486
        %1488 = vmatmul.mubr.f32.gmra.mrb[0].mxu0 %v1487
        %v1489 = vpop.f32.mrb[0].mxu0
        %v1490 = vadd.f32 %v1407, %v1489
        %v1491 = vpop.f32.mrb[0].mxu0
        %1492 = vdwg.mxu0
        %1493 = vmatprep.subr.mxu0 0.0
        %v1494 = vand.u32 %v1228, 4294901760
        %1495 = vmatpush1.msra.mxu0 %v1494
        %1496 = vmatprep.subr.mxu0 0.0
        %v1497 = vand.u32 %v1229, 4294901760
        %1498 = vmatpush1.msra.mxu0 %v1497
        %1499 = vmatprep.subr.mxu0 0.0
        %1500 = vmatpush1.msra.mxu0 0.0
        %1501 = vmatprep.subr.mxu0 0.0
        %1502 = vmatpush1.msra.mxu0 0.0
        %1503 = vmatprep.subr.mxu0 0.0
        %1504 = vmatpush1.msra.mxu0 0.0
        %1505 = vmatprep.subr.mxu0 0.0
        %1506 = vmatpush1.msra.mxu0 0.0
        %1507 = vmatprep.subr.mxu0 0.0
        %1508 = vmatpush1.msra.mxu0 0.0
        %1509 = vmatprep.subr.mxu0 0.0
        %1510 = vmatpush1.msra.mxu0 0.0
        %1511 = vmatprep.subr.mxu0 0.0
        %1512 = vmatpush1.msra.mxu0 0.0
        %1513 = vmatprep.subr.mxu0 0.0
        %1514 = vmatpush1.msra.mxu0 0.0
        %1515 = vmatprep.subr.mxu0 0.0
        %1516 = vmatpush1.msra.mxu0 0.0
        %1517 = vmatprep.subr.mxu0 0.0
        %1518 = vmatpush1.msra.mxu0 0.0
        %1519 = vmatprep.subr.mxu0 0.0
        %1520 = vmatpush1.msra.mxu0 0.0
        %1521 = vmatprep.subr.mxu0 0.0
        %1522 = vmatpush1.msra.mxu0 0.0
        %1523 = vmatprep.subr.mxu0 0.0
        %1524 = vmatpush1.msra.mxu0 0.0
        %1525 = vmatprep.subr.mxu0 0.0
        %1526 = vmatpush1.msra.mxu0 0.0
        %1527 = vmatprep.subr.mxu0 0.0
        %1528 = vmatpush1.msra.mxu0 0.0
        %1529 = vmatprep.subr.mxu0 0.0
        %1530 = vmatpush1.msra.mxu0 0.0
        %1531 = vmatprep.subr.mxu0 0.0
        %1532 = vmatpush1.msra.mxu0 0.0
        %1533 = vmatprep.subr.mxu0 0.0
        %1534 = vmatpush1.msra.mxu0 0.0
        %1535 = vmatprep.subr.mxu0 0.0
        %1536 = vmatpush1.msra.mxu0 0.0
        %1537 = vmatprep.subr.mxu0 0.0
        %1538 = vmatpush1.msra.mxu0 0.0
        %1539 = vmatprep.subr.mxu0 0.0
        %1540 = vmatpush1.msra.mxu0 0.0
        %1541 = vmatprep.subr.mxu0 0.0
        %1542 = vmatpush1.msra.mxu0 0.0
        %1543 = vmatprep.subr.mxu0 0.0
        %1544 = vmatpush1.msra.mxu0 0.0
        %1545 = vmatprep.subr.mxu0 0.0
        %1546 = vmatpush1.msra.mxu0 0.0
        %1547 = vmatprep.subr.mxu0 0.0
        %1548 = vmatpush1.msra.mxu0 0.0
        %1549 = vmatprep.subr.mxu0 0.0
        %1550 = vmatpush1.msra.mxu0 0.0
        %1551 = vmatprep.subr.mxu0 0.0
        %1552 = vmatpush1.msra.mxu0 0.0
        %1553 = vmatprep.subr.mxu0 0.0
        %1554 = vmatpush1.msra.mxu0 0.0
        %1555 = vmatprep.subr.mxu0 0.0
        %1556 = vmatpush1.msra.mxu0 0.0
        %1557 = vmatprep.subr.mxu0 0.0
        %1558 = vmatpush1.msra.mxu0 0.0
        %1559 = vmatprep.mubr.f32.mxu0 0.0
        %v1560 = vand.u32 %v1231, 4294901760
        %v1561 = vsub.f32 %v1231, %v1560
        %v1562 = vand.u32 %v1561, 4294901760
        %1563 = vmatmul.mubr.f32.gmra.mrb[0].mxu0 %v1562
        %v1564 = vpop.f32.mrb[0].mxu0
        %v1565 = vadd.f32 %v1483, %v1564
        %v1566 = vpop.f32.mrb[0].mxu0
        %1567 = vmatprep.mubr.f32.mxu0 0.0
        %v1568 = vand.u32 %v1234, 4294901760
        %v1569 = vsub.f32 %v1234, %v1568
        %v1570 = vand.u32 %v1569, 4294901760
        %1571 = vmatmul.mubr.f32.gmra.mrb[0].mxu0 %v1570
        %v1572 = vpop.f32.mrb[0].mxu0
        %v1573 = vadd.f32 %v1490, %v1572
        %v1574 = vpop.f32.mrb[0].mxu0
        %1575 = vdwg.mxu0
        %1576 = vmatprep.subr.mxu0 0.0
        %v1577 = vand.u32 %v1228, 4294901760
        %v1578 = vsub.f32 %v1228, %v1577
        %v1579 = vand.u32 %v1578, 4294901760
        %1580 = vmatpush1.msra.mxu0 %v1579
        %1581 = vmatprep.subr.mxu0 0.0
        %v1582 = vand.u32 %v1229, 4294901760
        %v1583 = vsub.f32 %v1229, %v1582
        %v1584 = vand.u32 %v1583, 4294901760
        %1585 = vmatpush1.msra.mxu0 %v1584
        %1586 = vmatprep.subr.mxu0 0.0
        %1587 = vmatpush1.msra.mxu0 0.0
        %1588 = vmatprep.subr.mxu0 0.0
        %1589 = vmatpush1.msra.mxu0 0.0
        %1590 = vmatprep.subr.mxu0 0.0
        %1591 = vmatpush1.msra.mxu0 0.0
        %1592 = vmatprep.subr.mxu0 0.0
        %1593 = vmatpush1.msra.mxu0 0.0
        %1594 = vmatprep.subr.mxu0 0.0
        %1595 = vmatpush1.msra.mxu0 0.0
        %1596 = vmatprep.subr.mxu0 0.0
        %1597 = vmatpush1.msra.mxu0 0.0
        %1598 = vmatprep.subr.mxu0 0.0
        %1599 = vmatpush1.msra.mxu0 0.0
        %1600 = vmatprep.subr.mxu0 0.0
        %1601 = vmatpush1.msra.mxu0 0.0
        %1602 = vmatprep.subr.mxu0 0.0
        %1603 = vmatpush1.msra.mxu0 0.0
        %1604 = vmatprep.subr.mxu0 0.0
        %1605 = vmatpush1.msra.mxu0 0.0
        %1606 = vmatprep.subr.mxu0 0.0
        %1607 = vmatpush1.msra.mxu0 0.0
        %1608 = vmatprep.subr.mxu0 0.0
        %1609 = vmatpush1.msra.mxu0 0.0
        %1610 = vmatprep.subr.mxu0 0.0
        %1611 = vmatpush1.msra.mxu0 0.0
        %1612 = vmatprep.subr.mxu0 0.0
        %1613 = vmatpush1.msra.mxu0 0.0
        %1614 = vmatprep.subr.mxu0 0.0
        %1615 = vmatpush1.msra.mxu0 0.0
        %1616 = vmatprep.subr.mxu0 0.0
        %1617 = vmatpush1.msra.mxu0 0.0
        %1618 = vmatprep.subr.mxu0 0.0
        %1619 = vmatpush1.msra.mxu0 0.0
        %1620 = vmatprep.subr.mxu0 0.0
        %1621 = vmatpush1.msra.mxu0 0.0
        %1622 = vmatprep.subr.mxu0 0.0
        %1623 = vmatpush1.msra.mxu0 0.0
        %1624 = vmatprep.subr.mxu0 0.0
        %1625 = vmatpush1.msra.mxu0 0.0
        %1626 = vmatprep.subr.mxu0 0.0
        %1627 = vmatpush1.msra.mxu0 0.0
        %1628 = vmatprep.subr.mxu0 0.0
        %1629 = vmatpush1.msra.mxu0 0.0
        %1630 = vmatprep.subr.mxu0 0.0
        %1631 = vmatpush1.msra.mxu0 0.0
        %1632 = vmatprep.subr.mxu0 0.0
        %1633 = vmatpush1.msra.mxu0 0.0
        %1634 = vmatprep.subr.mxu0 0.0
        %1635 = vmatpush1.msra.mxu0 0.0
        %1636 = vmatprep.subr.mxu0 0.0
        %1637 = vmatpush1.msra.mxu0 0.0
        %1638 = vmatprep.subr.mxu0 0.0
        %1639 = vmatpush1.msra.mxu0 0.0
        %1640 = vmatprep.subr.mxu0 0.0
        %1641 = vmatpush1.msra.mxu0 0.0
        %1642 = vmatprep.subr.mxu0 0.0
        %1643 = vmatpush1.msra.mxu0 0.0
        %1644 = vmatprep.subr.mxu0 0.0
        %1645 = vmatpush1.msra.mxu0 0.0
        %1646 = vmatprep.mubr.f32.mxu0 0.0
        %v1647 = vand.u32 %v1231, 4294901760
        %1648 = vmatmul.mubr.f32.gmra.mrb[0].mxu0 %v1647
        %v1649 = vpop.f32.mrb[0].mxu0
        %v1650 = vadd.f32 %v1565, %v1649
        %v1651 = vpop.f32.mrb[0].mxu0
        %1652 = vmatprep.mubr.f32.mxu0 0.0
        %v1653 = vand.u32 %v1234, 4294901760
        %1654 = vmatmul.mubr.f32.gmra.mrb[0].mxu0 %v1653
        %v1655 = vpop.f32.mrb[0].mxu0
        %v1656 = vadd.f32 %v1573, %v1655
        %v1657 = vpop.f32.mrb[0].mxu0
        %1658 = vdwg.mxu0
        %1659 = vmatprep.subr.mxu0 0.0
        %v1660 = vand.u32 %v1228, 4294901760
        %1661 = vmatpush1.msra.mxu0 %v1660
        %1662 = vmatprep.subr.mxu0 0.0
        %v1663 = vand.u32 %v1229, 4294901760
        %1664 = vmatpush1.msra.mxu0 %v1663
        %1665 = vmatprep.subr.mxu0 0.0
        %1666 = vmatpush1.msra.mxu0 0.0
        %1667 = vmatprep.subr.mxu0 0.0
        %1668 = vmatpush1.msra.mxu0 0.0
        %1669 = vmatprep.subr.mxu0 0.0
        %1670 = vmatpush1.msra.mxu0 0.0
        %1671 = vmatprep.subr.mxu0 0.0
        %1672 = vmatpush1.msra.mxu0 0.0
        %1673 = vmatprep.subr.mxu0 0.0
        %1674 = vmatpush1.msra.mxu0 0.0
        %1675 = vmatprep.subr.mxu0 0.0
        %1676 = vmatpush1.msra.mxu0 0.0
        %1677 = vmatprep.subr.mxu0 0.0
        %1678 = vmatpush1.msra.mxu0 0.0
        %1679 = vmatprep.subr.mxu0 0.0
        %1680 = vmatpush1.msra.mxu0 0.0
        %1681 = vmatprep.subr.mxu0 0.0
        %1682 = vmatpush1.msra.mxu0 0.0
        %1683 = vmatprep.subr.mxu0 0.0
        %1684 = vmatpush1.msra.mxu0 0.0
        %1685 = vmatprep.subr.mxu0 0.0
        %1686 = vmatpush1.msra.mxu0 0.0
        %1687 = vmatprep.subr.mxu0 0.0
        %1688 = vmatpush1.msra.mxu0 0.0
        %1689 = vmatprep.subr.mxu0 0.0
        %1690 = vmatpush1.msra.mxu0 0.0
        %1691 = vmatprep.subr.mxu0 0.0
        %1692 = vmatpush1.msra.mxu0 0.0
        %1693 = vmatprep.subr.mxu0 0.0
        %1694 = vmatpush1.msra.mxu0 0.0
        %1695 = vmatprep.subr.mxu0 0.0
        %1696 = vmatpush1.msra.mxu0 0.0
        %1697 = vmatprep.subr.mxu0 0.0
        %1698 = vmatpush1.msra.mxu0 0.0
        %1699 = vmatprep.subr.mxu0 0.0
        %1700 = vmatpush1.msra.mxu0 0.0
        %1701 = vmatprep.subr.mxu0 0.0
        %1702 = vmatpush1.msra.mxu0 0.0
        %1703 = vmatprep.subr.mxu0 0.0
        %1704 = vmatpush1.msra.mxu0 0.0
        %1705 = vmatprep.subr.mxu0 0.0
        %1706 = vmatpush1.msra.mxu0 0.0
        %1707 = vmatprep.subr.mxu0 0.0
        %1708 = vmatpush1.msra.mxu0 0.0
        %1709 = vmatprep.subr.mxu0 0.0
        %1710 = vmatpush1.msra.mxu0 0.0
        %1711 = vmatprep.subr.mxu0 0.0
        %1712 = vmatpush1.msra.mxu0 0.0
        %1713 = vmatprep.subr.mxu0 0.0
        %1714 = vmatpush1.msra.mxu0 0.0
        %1715 = vmatprep.subr.mxu0 0.0
        %1716 = vmatpush1.msra.mxu0 0.0
        %1717 = vmatprep.subr.mxu0 0.0
        %1718 = vmatpush1.msra.mxu0 0.0
        %1719 = vmatprep.subr.mxu0 0.0
        %1720 = vmatpush1.msra.mxu0 0.0
        %1721 = vmatprep.subr.mxu0 0.0
        %1722 = vmatpush1.msra.mxu0 0.0
        %1723 = vmatprep.subr.mxu0 0.0
        %1724 = vmatpush1.msra.mxu0 0.0
        %1725 = vmatprep.mubr.f32.mxu0 0.0
        %v1726 = vand.u32 %v1231, 4294901760
        %1727 = vmatmul.mubr.f32.gmra.mrb[0].mxu0 %v1726
        %v1728 = vpop.f32.mrb[0].mxu0
        %v1729 = vadd.f32 %v1650, %v1728
        %v1730 = vpop.f32.mrb[0].mxu0
        %1731 = vmatprep.mubr.f32.mxu0 0.0
        %v1732 = vand.u32 %v1234, 4294901760
        %1733 = vmatmul.mubr.f32.gmra.mrb[0].mxu0 %v1732
        %v1734 = vpop.f32.mrb[0].mxu0
        %v1735 = vadd.f32 %v1656, %v1734
        %v1736 = vpop.f32.mrb[0].mxu0
        %1737 = vdwg.mxu0
        %v1738 = vadd.f32 %v1215, %v1729
        %v1739 = vadd.f32 %v1221, %v1735
        %s1740 = scalar_lea.vmem %s170, 48 [#allocation2]
        %v1741 = vld [vmem:[%s1740] sm:$0xff]
        %v1742 = vld [vmem:[%s1740 + $0x8] sm:$0xff]
        %s1743 = scalar_lea.vmem [#allocation5], 48
        %v1744 = vld [vmem:[%s1743] sm:$0xff]
        %v1745 = vld [vmem:[%s1743 + $0x8] sm:$0xff]
        %v1747 = vsel %vm207, %v1741, 0
        %v1750 = vsel %vm207, %v1742, 0
        %1752 = vmatprep.subr.mxu0 0.0
        %v1753 = vand.u32 %v1744, 4294901760
        %1754 = vmatpush1.msra.mxu0 %v1753
        %1755 = vmatprep.subr.mxu0 0.0
        %v1756 = vand.u32 %v1745, 4294901760
        %1757 = vmatpush1.msra.mxu0 %v1756
        %1758 = vmatprep.subr.mxu0 0.0
        %1759 = vmatpush1.msra.mxu0 0.0
        %1760 = vmatprep.subr.mxu0 0.0
        %1761 = vmatpush1.msra.mxu0 0.0
        %1762 = vmatprep.subr.mxu0 0.0
        %1763 = vmatpush1.msra.mxu0 0.0
        %1764 = vmatprep.subr.mxu0 0.0
        %1765 = vmatpush1.msra.mxu0 0.0
        %1766 = vmatprep.subr.mxu0 0.0
        %1767 = vmatpush1.msra.mxu0 0.0
        %1768 = vmatprep.subr.mxu0 0.0
        %1769 = vmatpush1.msra.mxu0 0.0
        %1770 = vmatprep.subr.mxu0 0.0
        %1771 = vmatpush1.msra.mxu0 0.0
        %1772 = vmatprep.subr.mxu0 0.0
        %1773 = vmatpush1.msra.mxu0 0.0
        %1774 = vmatprep.subr.mxu0 0.0
        %1775 = vmatpush1.msra.mxu0 0.0
        %1776 = vmatprep.subr.mxu0 0.0
        %1777 = vmatpush1.msra.mxu0 0.0
        %1778 = vmatprep.subr.mxu0 0.0
        %1779 = vmatpush1.msra.mxu0 0.0
        %1780 = vmatprep.subr.mxu0 0.0
        %1781 = vmatpush1.msra.mxu0 0.0
        %1782 = vmatprep.subr.mxu0 0.0
        %1783 = vmatpush1.msra.mxu0 0.0
        %1784 = vmatprep.subr.mxu0 0.0
        %1785 = vmatpush1.msra.mxu0 0.0
        %1786 = vmatprep.subr.mxu0 0.0
        %1787 = vmatpush1.msra.mxu0 0.0
        %1788 = vmatprep.subr.mxu0 0.0
        %1789 = vmatpush1.msra.mxu0 0.0
        %1790 = vmatprep.subr.mxu0 0.0
        %1791 = vmatpush1.msra.mxu0 0.0
        %1792 = vmatprep.subr.mxu0 0.0
        %1793 = vmatpush1.msra.mxu0 0.0
        %1794 = vmatprep.subr.mxu0 0.0
        %1795 = vmatpush1.msra.mxu0 0.0
        %1796 = vmatprep.subr.mxu0 0.0
        %1797 = vmatpush1.msra.mxu0 0.0
        %1798 = vmatprep.subr.mxu0 0.0
        %1799 = vmatpush1.msra.mxu0 0.0
        %1800 = vmatprep.subr.mxu0 0.0
        %1801 = vmatpush1.msra.mxu0 0.0
        %1802 = vmatprep.subr.mxu0 0.0
        %1803 = vmatpush1.msra.mxu0 0.0
        %1804 = vmatprep.subr.mxu0 0.0
        %1805 = vmatpush1.msra.mxu0 0.0
        %1806 = vmatprep.subr.mxu0 0.0
        %1807 = vmatpush1.msra.mxu0 0.0
        %1808 = vmatprep.subr.mxu0 0.0
        %1809 = vmatpush1.msra.mxu0 0.0
        %1810 = vmatprep.subr.mxu0 0.0
        %1811 = vmatpush1.msra.mxu0 0.0
        %1812 = vmatprep.subr.mxu0 0.0
        %1813 = vmatpush1.msra.mxu0 0.0
        %1814 = vmatprep.subr.mxu0 0.0
        %1815 = vmatpush1.msra.mxu0 0.0
        %1816 = vmatprep.subr.mxu0 0.0
        %1817 = vmatpush1.msra.mxu0 0.0
        %1818 = vmatprep.mubr.f32.mxu0 0.0
        %v1819 = vand.u32 %v1747, 4294901760
        %v1820 = vsub.f32 %v1747, %v1819
        %v1821 = vand.u32 %v1820, 4294901760
        %v1822 = vsub.f32 %v1820, %v1821
        %v1823 = vand.u32 %v1822, 4294901760
        %1824 = vmatmul.mubr.f32.gmra.mrb[0].mxu0 %v1823
        %v1825 = vpop.f32.mrb[0].mxu0
        %v1826 = vadd.f32 0.0, %v1825
        %v1827 = vpop.f32.mrb[0].mxu0
        %1828 = vmatprep.mubr.f32.mxu0 0.0
        %v1829 = vand.u32 %v1750, 4294901760
        %v1830 = vsub.f32 %v1750, %v1829
        %v1831 = vand.u32 %v1830, 4294901760
        %v1832 = vsub.f32 %v1830, %v1831
        %v1833 = vand.u32 %v1832, 4294901760
        %1834 = vmatmul.mubr.f32.gmra.mrb[0].mxu0 %v1833
        %v1835 = vpop.f32.mrb[0].mxu0
        %v1836 = vadd.f32 0.0, %v1835
        %v1837 = vpop.f32.mrb[0].mxu0
        %1838 = vdwg.mxu0
        %1839 = vmatprep.subr.mxu0 0.0
        %v1840 = vand.u32 %v1744, 4294901760
        %v1841 = vsub.f32 %v1744, %v1840
        %v1842 = vand.u32 %v1841, 4294901760
        %v1843 = vsub.f32 %v1841, %v1842
        %v1844 = vand.u32 %v1843, 4294901760
        %1845 = vmatpush1.msra.mxu0 %v1844
        %1846 = vmatprep.subr.mxu0 0.0
        %v1847 = vand.u32 %v1745, 4294901760
        %v1848 = vsub.f32 %v1745, %v1847
        %v1849 = vand.u32 %v1848, 4294901760
        %v1850 = vsub.f32 %v1848, %v1849
        %v1851 = vand.u32 %v1850, 4294901760
        %1852 = vmatpush1.msra.mxu0 %v1851
        %1853 = vmatprep.subr.mxu0 0.0
        %1854 = vmatpush1.msra.mxu0 0.0
        %1855 = vmatprep.subr.mxu0 0.0
        %1856 = vmatpush1.msra.mxu0 0.0
        %1857 = vmatprep.subr.mxu0 0.0
        %1858 = vmatpush1.msra.mxu0 0.0
        %1859 = vmatprep.subr.mxu0 0.0
        %1860 = vmatpush1.msra.mxu0 0.0
        %1861 = vmatprep.subr.mxu0 0.0
        %1862 = vmatpush1.msra.mxu0 0.0
        %1863 = vmatprep.subr.mxu0 0.0
        %1864 = vmatpush1.msra.mxu0 0.0
        %1865 = vmatprep.subr.mxu0 0.0
        %1866 = vmatpush1.msra.mxu0 0.0
        %1867 = vmatprep.subr.mxu0 0.0
        %1868 = vmatpush1.msra.mxu0 0.0
        %1869 = vmatprep.subr.mxu0 0.0
        %1870 = vmatpush1.msra.mxu0 0.0
        %1871 = vmatprep.subr.mxu0 0.0
        %1872 = vmatpush1.msra.mxu0 0.0
        %1873 = vmatprep.subr.mxu0 0.0
        %1874 = vmatpush1.msra.mxu0 0.0
        %1875 = vmatprep.subr.mxu0 0.0
        %1876 = vmatpush1.msra.mxu0 0.0
        %1877 = vmatprep.subr.mxu0 0.0
        %1878 = vmatpush1.msra.mxu0 0.0
        %1879 = vmatprep.subr.mxu0 0.0
        %1880 = vmatpush1.msra.mxu0 0.0
        %1881 = vmatprep.subr.mxu0 0.0
        %1882 = vmatpush1.msra.mxu0 0.0
        %1883 = vmatprep.subr.mxu0 0.0
        %1884 = vmatpush1.msra.mxu0 0.0
        %1885 = vmatprep.subr.mxu0 0.0
        %1886 = vmatpush1.msra.mxu0 0.0
        %1887 = vmatprep.subr.mxu0 0.0
        %1888 = vmatpush1.msra.mxu0 0.0
        %1889 = vmatprep.subr.mxu0 0.0
        %1890 = vmatpush1.msra.mxu0 0.0
        %1891 = vmatprep.subr.mxu0 0.0
        %1892 = vmatpush1.msra.mxu0 0.0
        %1893 = vmatprep.subr.mxu0 0.0
        %1894 = vmatpush1.msra.mxu0 0.0
        %1895 = vmatprep.subr.mxu0 0.0
        %1896 = vmatpush1.msra.mxu0 0.0
        %1897 = vmatprep.subr.mxu0 0.0
        %1898 = vmatpush1.msra.mxu0 0.0
        %1899 = vmatprep.subr.mxu0 0.0
        %1900 = vmatpush1.msra.mxu0 0.0
        %1901 = vmatprep.subr.mxu0 0.0
        %1902 = vmatpush1.msra.mxu0 0.0
        %1903 = vmatprep.subr.mxu0 0.0
        %1904 = vmatpush1.msra.mxu0 0.0
        %1905 = vmatprep.subr.mxu0 0.0
        %1906 = vmatpush1.msra.mxu0 0.0
        %1907 = vmatprep.subr.mxu0 0.0
        %1908 = vmatpush1.msra.mxu0 0.0
        %1909 = vmatprep.subr.mxu0 0.0
        %1910 = vmatpush1.msra.mxu0 0.0
        %1911 = vmatprep.subr.mxu0 0.0
        %1912 = vmatpush1.msra.mxu0 0.0
        %1913 = vmatprep.mubr.f32.mxu0 0.0
        %v1914 = vand.u32 %v1747, 4294901760
        %1915 = vmatmul.mubr.f32.gmra.mrb[0].mxu0 %v1914
        %v1916 = vpop.f32.mrb[0].mxu0
        %v1917 = vadd.f32 %v1826, %v1916
        %v1918 = vpop.f32.mrb[0].mxu0
        %1919 = vmatprep.mubr.f32.mxu0 0.0
        %v1920 = vand.u32 %v1750, 4294901760
        %1921 = vmatmul.mubr.f32.gmra.mrb[0].mxu0 %v1920
        %v1922 = vpop.f32.mrb[0].mxu0
        %v1923 = vadd.f32 %v1836, %v1922
        %v1924 = vpop.f32.mrb[0].mxu0
        %1925 = vdwg.mxu0
        %1926 = vmatprep.subr.mxu0 0.0
        %v1927 = vand.u32 %v1744, 4294901760
        %v1928 = vsub.f32 %v1744, %v1927
        %1929 = vmatpush1.msra.mxu0 %v1928
        %1930 = vmatprep.subr.mxu0 0.0
        %v1931 = vand.u32 %v1745, 4294901760
        %v1932 = vsub.f32 %v1745, %v1931
        %1933 = vmatpush1.msra.mxu0 %v1932
        %1934 = vmatprep.subr.mxu0 0.0
        %1935 = vmatpush1.msra.mxu0 0.0
        %1936 = vmatprep.subr.mxu0 0.0
        %1937 = vmatpush1.msra.mxu0 0.0
        %1938 = vmatprep.subr.mxu0 0.0
        %1939 = vmatpush1.msra.mxu0 0.0
        %1940 = vmatprep.subr.mxu0 0.0
        %1941 = vmatpush1.msra.mxu0 0.0
        %1942 = vmatprep.subr.mxu0 0.0
        %1943 = vmatpush1.msra.mxu0 0.0
        %1944 = vmatprep.subr.mxu0 0.0
        %1945 = vmatpush1.msra.mxu0 0.0
        %1946 = vmatprep.subr.mxu0 0.0
        %1947 = vmatpush1.msra.mxu0 0.0
        %1948 = vmatprep.subr.mxu0 0.0
        %1949 = vmatpush1.msra.mxu0 0.0
        %1950 = vmatprep.subr.mxu0 0.0
        %1951 = vmatpush1.msra.mxu0 0.0
        %1952 = vmatprep.subr.mxu0 0.0
        %1953 = vmatpush1.msra.mxu0 0.0
        %1954 = vmatprep.subr.mxu0 0.0
        %1955 = vmatpush1.msra.mxu0 0.0
        %1956 = vmatprep.subr.mxu0 0.0
        %1957 = vmatpush1.msra.mxu0 0.0
        %1958 = vmatprep.subr.mxu0 0.0
        %1959 = vmatpush1.msra.mxu0 0.0
        %1960 = vmatprep.subr.mxu0 0.0
        %1961 = vmatpush1.msra.mxu0 0.0
        %1962 = vmatprep.subr.mxu0 0.0
        %1963 = vmatpush1.msra.mxu0 0.0
        %1964 = vmatprep.subr.mxu0 0.0
        %1965 = vmatpush1.msra.mxu0 0.0
        %1966 = vmatprep.subr.mxu0 0.0
        %1967 = vmatpush1.msra.mxu0 0.0
        %1968 = vmatprep.subr.mxu0 0.0
        %1969 = vmatpush1.msra.mxu0 0.0
        %1970 = vmatprep.subr.mxu0 0.0
        %1971 = vmatpush1.msra.mxu0 0.0
        %1972 = vmatprep.subr.mxu0 0.0
        %1973 = vmatpush1.msra.mxu0 0.0
        %1974 = vmatprep.subr.mxu0 0.0
        %1975 = vmatpush1.msra.mxu0 0.0
        %1976 = vmatprep.subr.mxu0 0.0
        %1977 = vmatpush1.msra.mxu0 0.0
        %1978 = vmatprep.subr.mxu0 0.0
        %1979 = vmatpush1.msra.mxu0 0.0
        %1980 = vmatprep.subr.mxu0 0.0
        %1981 = vmatpush1.msra.mxu0 0.0
        %1982 = vmatprep.subr.mxu0 0.0
        %1983 = vmatpush1.msra.mxu0 0.0
        %1984 = vmatprep.subr.mxu0 0.0
        %1985 = vmatpush1.msra.mxu0 0.0
        %1986 = vmatprep.subr.mxu0 0.0
        %1987 = vmatpush1.msra.mxu0 0.0
        %1988 = vmatprep.subr.mxu0 0.0
        %1989 = vmatpush1.msra.mxu0 0.0
        %1990 = vmatprep.subr.mxu0 0.0
        %1991 = vmatpush1.msra.mxu0 0.0
        %1992 = vmatprep.subr.mxu0 0.0
        %1993 = vmatpush1.msra.mxu0 0.0
        %1994 = vmatprep.mubr.f32.mxu0 0.0
        %v1995 = vand.u32 %v1747, 4294901760
        %v1996 = vsub.f32 %v1747, %v1995
        %1997 = vmatmul.mubr.f32.gmra.mrb[0].mxu0 %v1996
        %v1998 = vpop.f32.mrb[0].mxu0
        %v1999 = vadd.f32 %v1917, %v1998
        %v2000 = vpop.f32.mrb[0].mxu0
        %2001 = vmatprep.mubr.f32.mxu0 0.0
        %v2002 = vand.u32 %v1750, 4294901760
        %v2003 = vsub.f32 %v1750, %v2002
        %2004 = vmatmul.mubr.f32.gmra.mrb[0].mxu0 %v2003
        %v2005 = vpop.f32.mrb[0].mxu0
        %v2006 = vadd.f32 %v1923, %v2005
        %v2007 = vpop.f32.mrb[0].mxu0
        %2008 = vdwg.mxu0
        %2009 = vmatprep.subr.mxu0 0.0
        %v2010 = vand.u32 %v1744, 4294901760
        %2011 = vmatpush1.msra.mxu0 %v2010
        %2012 = vmatprep.subr.mxu0 0.0
        %v2013 = vand.u32 %v1745, 4294901760
        %2014 = vmatpush1.msra.mxu0 %v2013
        %2015 = vmatprep.subr.mxu0 0.0
        %2016 = vmatpush1.msra.mxu0 0.0
        %2017 = vmatprep.subr.mxu0 0.0
        %2018 = vmatpush1.msra.mxu0 0.0
        %2019 = vmatprep.subr.mxu0 0.0
        %2020 = vmatpush1.msra.mxu0 0.0
        %2021 = vmatprep.subr.mxu0 0.0
        %2022 = vmatpush1.msra.mxu0 0.0
        %2023 = vmatprep.subr.mxu0 0.0
        %2024 = vmatpush1.msra.mxu0 0.0
        %2025 = vmatprep.subr.mxu0 0.0
        %2026 = vmatpush1.msra.mxu0 0.0
        %2027 = vmatprep.subr.mxu0 0.0
        %2028 = vmatpush1.msra.mxu0 0.0
        %2029 = vmatprep.subr.mxu0 0.0
        %2030 = vmatpush1.msra.mxu0 0.0
        %2031 = vmatprep.subr.mxu0 0.0
        %2032 = vmatpush1.msra.mxu0 0.0
        %2033 = vmatprep.subr.mxu0 0.0
        %2034 = vmatpush1.msra.mxu0 0.0
        %2035 = vmatprep.subr.mxu0 0.0
        %2036 = vmatpush1.msra.mxu0 0.0
        %2037 = vmatprep.subr.mxu0 0.0
        %2038 = vmatpush1.msra.mxu0 0.0
        %2039 = vmatprep.subr.mxu0 0.0
        %2040 = vmatpush1.msra.mxu0 0.0
        %2041 = vmatprep.subr.mxu0 0.0
        %2042 = vmatpush1.msra.mxu0 0.0
        %2043 = vmatprep.subr.mxu0 0.0
        %2044 = vmatpush1.msra.mxu0 0.0
        %2045 = vmatprep.subr.mxu0 0.0
        %2046 = vmatpush1.msra.mxu0 0.0
        %2047 = vmatprep.subr.mxu0 0.0
        %2048 = vmatpush1.msra.mxu0 0.0
        %2049 = vmatprep.subr.mxu0 0.0
        %2050 = vmatpush1.msra.mxu0 0.0
        %2051 = vmatprep.subr.mxu0 0.0
        %2052 = vmatpush1.msra.mxu0 0.0
        %2053 = vmatprep.subr.mxu0 0.0
        %2054 = vmatpush1.msra.mxu0 0.0
        %2055 = vmatprep.subr.mxu0 0.0
        %2056 = vmatpush1.msra.mxu0 0.0
        %2057 = vmatprep.subr.mxu0 0.0
        %2058 = vmatpush1.msra.mxu0 0.0
        %2059 = vmatprep.subr.mxu0 0.0
        %2060 = vmatpush1.msra.mxu0 0.0
        %2061 = vmatprep.subr.mxu0 0.0
        %2062 = vmatpush1.msra.mxu0 0.0
        %2063 = vmatprep.subr.mxu0 0.0
        %2064 = vmatpush1.msra.mxu0 0.0
        %2065 = vmatprep.subr.mxu0 0.0
        %2066 = vmatpush1.msra.mxu0 0.0
        %2067 = vmatprep.subr.mxu0 0.0
        %2068 = vmatpush1.msra.mxu0 0.0
        %2069 = vmatprep.subr.mxu0 0.0
        %2070 = vmatpush1.msra.mxu0 0.0
        %2071 = vmatprep.subr.mxu0 0.0
        %2072 = vmatpush1.msra.mxu0 0.0
        %2073 = vmatprep.subr.mxu0 0.0
        %2074 = vmatpush1.msra.mxu0 0.0
        %2075 = vmatprep.mubr.f32.mxu0 0.0
        %v2076 = vand.u32 %v1747, 4294901760
        %v2077 = vsub.f32 %v1747, %v2076
        %v2078 = vand.u32 %v2077, 4294901760
        %2079 = vmatmul.mubr.f32.gmra.mrb[0].mxu0 %v2078
        %v2080 = vpop.f32.mrb[0].mxu0
        %v2081 = vadd.f32 %v1999, %v2080
        %v2082 = vpop.f32.mrb[0].mxu0
        %2083 = vmatprep.mubr.f32.mxu0 0.0
        %v2084 = vand.u32 %v1750, 4294901760
        %v2085 = vsub.f32 %v1750, %v2084
        %v2086 = vand.u32 %v2085, 4294901760
        %2087 = vmatmul.mubr.f32.gmra.mrb[0].mxu0 %v2086
        %v2088 = vpop.f32.mrb[0].mxu0
        %v2089 = vadd.f32 %v2006, %v2088
        %v2090 = vpop.f32.mrb[0].mxu0
        %2091 = vdwg.mxu0
        %2092 = vmatprep.subr.mxu0 0.0
        %v2093 = vand.u32 %v1744, 4294901760
        %v2094 = vsub.f32 %v1744, %v2093
        %v2095 = vand.u32 %v2094, 4294901760
        %2096 = vmatpush1.msra.mxu0 %v2095
        %2097 = vmatprep.subr.mxu0 0.0
        %v2098 = vand.u32 %v1745, 4294901760
        %v2099 = vsub.f32 %v1745, %v2098
        %v2100 = vand.u32 %v2099, 4294901760
        %2101 = vmatpush1.msra.mxu0 %v2100
        %2102 = vmatprep.subr.mxu0 0.0
        %2103 = vmatpush1.msra.mxu0 0.0
        %2104 = vmatprep.subr.mxu0 0.0
        %2105 = vmatpush1.msra.mxu0 0.0
        %2106 = vmatprep.subr.mxu0 0.0
        %2107 = vmatpush1.msra.mxu0 0.0
        %2108 = vmatprep.subr.mxu0 0.0
        %2109 = vmatpush1.msra.mxu0 0.0
        %2110 = vmatprep.subr.mxu0 0.0
        %2111 = vmatpush1.msra.mxu0 0.0
        %2112 = vmatprep.subr.mxu0 0.0
        %2113 = vmatpush1.msra.mxu0 0.0
        %2114 = vmatprep.subr.mxu0 0.0
        %2115 = vmatpush1.msra.mxu0 0.0
        %2116 = vmatprep.subr.mxu0 0.0
        %2117 = vmatpush1.msra.mxu0 0.0
        %2118 = vmatprep.subr.mxu0 0.0
        %2119 = vmatpush1.msra.mxu0 0.0
        %2120 = vmatprep.subr.mxu0 0.0
        %2121 = vmatpush1.msra.mxu0 0.0
        %2122 = vmatprep.subr.mxu0 0.0
        %2123 = vmatpush1.msra.mxu0 0.0
        %2124 = vmatprep.subr.mxu0 0.0
        %2125 = vmatpush1.msra.mxu0 0.0
        %2126 = vmatprep.subr.mxu0 0.0
        %2127 = vmatpush1.msra.mxu0 0.0
        %2128 = vmatprep.subr.mxu0 0.0
        %2129 = vmatpush1.msra.mxu0 0.0
        %2130 = vmatprep.subr.mxu0 0.0
        %2131 = vmatpush1.msra.mxu0 0.0
        %2132 = vmatprep.subr.mxu0 0.0
        %2133 = vmatpush1.msra.mxu0 0.0
        %2134 = vmatprep.subr.mxu0 0.0
        %2135 = vmatpush1.msra.mxu0 0.0
        %2136 = vmatprep.subr.mxu0 0.0
        %2137 = vmatpush1.msra.mxu0 0.0
        %2138 = vmatprep.subr.mxu0 0.0
        %2139 = vmatpush1.msra.mxu0 0.0
        %2140 = vmatprep.subr.mxu0 0.0
        %2141 = vmatpush1.msra.mxu0 0.0
        %2142 = vmatprep.subr.mxu0 0.0
        %2143 = vmatpush1.msra.mxu0 0.0
        %2144 = vmatprep.subr.mxu0 0.0
        %2145 = vmatpush1.msra.mxu0 0.0
        %2146 = vmatprep.subr.mxu0 0.0
        %2147 = vmatpush1.msra.mxu0 0.0
        %2148 = vmatprep.subr.mxu0 0.0
        %2149 = vmatpush1.msra.mxu0 0.0
        %2150 = vmatprep.subr.mxu0 0.0
        %2151 = vmatpush1.msra.mxu0 0.0
        %2152 = vmatprep.subr.mxu0 0.0
        %2153 = vmatpush1.msra.mxu0 0.0
        %2154 = vmatprep.subr.mxu0 0.0
        %2155 = vmatpush1.msra.mxu0 0.0
        %2156 = vmatprep.subr.mxu0 0.0
        %2157 = vmatpush1.msra.mxu0 0.0
        %2158 = vmatprep.subr.mxu0 0.0
        %2159 = vmatpush1.msra.mxu0 0.0
        %2160 = vmatprep.subr.mxu0 0.0
        %2161 = vmatpush1.msra.mxu0 0.0
        %2162 = vmatprep.mubr.f32.mxu0 0.0
        %v2163 = vand.u32 %v1747, 4294901760
        %2164 = vmatmul.mubr.f32.gmra.mrb[0].mxu0 %v2163
        %v2165 = vpop.f32.mrb[0].mxu0
        %v2166 = vadd.f32 %v2081, %v2165
        %v2167 = vpop.f32.mrb[0].mxu0
        %2168 = vmatprep.mubr.f32.mxu0 0.0
        %v2169 = vand.u32 %v1750, 4294901760
        %2170 = vmatmul.mubr.f32.gmra.mrb[0].mxu0 %v2169
        %v2171 = vpop.f32.mrb[0].mxu0
        %v2172 = vadd.f32 %v2089, %v2171
        %v2173 = vpop.f32.mrb[0].mxu0
        %2174 = vdwg.mxu0
        %2175 = vmatprep.subr.mxu0 0.0
        %v2176 = vand.u32 %v1744, 4294901760
        %2177 = vmatpush1.msra.mxu0 %v2176
        %2178 = vmatprep.subr.mxu0 0.0
        %v2179 = vand.u32 %v1745, 4294901760
        %2180 = vmatpush1.msra.mxu0 %v2179
        %2181 = vmatprep.subr.mxu0 0.0
        %2182 = vmatpush1.msra.mxu0 0.0
        %2183 = vmatprep.subr.mxu0 0.0
        %2184 = vmatpush1.msra.mxu0 0.0
        %2185 = vmatprep.subr.mxu0 0.0
        %2186 = vmatpush1.msra.mxu0 0.0
        %2187 = vmatprep.subr.mxu0 0.0
        %2188 = vmatpush1.msra.mxu0 0.0
        %2189 = vmatprep.subr.mxu0 0.0
        %2190 = vmatpush1.msra.mxu0 0.0
        %2191 = vmatprep.subr.mxu0 0.0
        %2192 = vmatpush1.msra.mxu0 0.0
        %2193 = vmatprep.subr.mxu0 0.0
        %2194 = vmatpush1.msra.mxu0 0.0
        %2195 = vmatprep.subr.mxu0 0.0
        %2196 = vmatpush1.msra.mxu0 0.0
        %2197 = vmatprep.subr.mxu0 0.0
        %2198 = vmatpush1.msra.mxu0 0.0
        %2199 = vmatprep.subr.mxu0 0.0
        %2200 = vmatpush1.msra.mxu0 0.0
        %2201 = vmatprep.subr.mxu0 0.0
        %2202 = vmatpush1.msra.mxu0 0.0
        %2203 = vmatprep.subr.mxu0 0.0
        %2204 = vmatpush1.msra.mxu0 0.0
        %2205 = vmatprep.subr.mxu0 0.0
        %2206 = vmatpush1.msra.mxu0 0.0
        %2207 = vmatprep.subr.mxu0 0.0
        %2208 = vmatpush1.msra.mxu0 0.0
        %2209 = vmatprep.subr.mxu0 0.0
        %2210 = vmatpush1.msra.mxu0 0.0
        %2211 = vmatprep.subr.mxu0 0.0
        %2212 = vmatpush1.msra.mxu0 0.0
        %2213 = vmatprep.subr.mxu0 0.0
        %2214 = vmatpush1.msra.mxu0 0.0
        %2215 = vmatprep.subr.mxu0 0.0
        %2216 = vmatpush1.msra.mxu0 0.0
        %2217 = vmatprep.subr.mxu0 0.0
        %2218 = vmatpush1.msra.mxu0 0.0
        %2219 = vmatprep.subr.mxu0 0.0
        %2220 = vmatpush1.msra.mxu0 0.0
        %2221 = vmatprep.subr.mxu0 0.0
        %2222 = vmatpush1.msra.mxu0 0.0
        %2223 = vmatprep.subr.mxu0 0.0
        %2224 = vmatpush1.msra.mxu0 0.0
        %2225 = vmatprep.subr.mxu0 0.0
        %2226 = vmatpush1.msra.mxu0 0.0
        %2227 = vmatprep.subr.mxu0 0.0
        %2228 = vmatpush1.msra.mxu0 0.0
        %2229 = vmatprep.subr.mxu0 0.0
        %2230 = vmatpush1.msra.mxu0 0.0
        %2231 = vmatprep.subr.mxu0 0.0
        %2232 = vmatpush1.msra.mxu0 0.0
        %2233 = vmatprep.subr.mxu0 0.0
        %2234 = vmatpush1.msra.mxu0 0.0
        %2235 = vmatprep.subr.mxu0 0.0
        %2236 = vmatpush1.msra.mxu0 0.0
        %2237 = vmatprep.subr.mxu0 0.0
        %2238 = vmatpush1.msra.mxu0 0.0
        %2239 = vmatprep.subr.mxu0 0.0
        %2240 = vmatpush1.msra.mxu0 0.0
        %2241 = vmatprep.mubr.f32.mxu0 0.0
        %v2242 = vand.u32 %v1747, 4294901760
        %2243 = vmatmul.mubr.f32.gmra.mrb[0].mxu0 %v2242
        %v2244 = vpop.f32.mrb[0].mxu0
        %v2245 = vadd.f32 %v2166, %v2244
        %v2246 = vpop.f32.mrb[0].mxu0
        %2247 = vmatprep.mubr.f32.mxu0 0.0
        %v2248 = vand.u32 %v1750, 4294901760
        %2249 = vmatmul.mubr.f32.gmra.mrb[0].mxu0 %v2248
        %v2250 = vpop.f32.mrb[0].mxu0
        %v2251 = vadd.f32 %v2172, %v2250
        %v2252 = vpop.f32.mrb[0].mxu0
        %2253 = vdwg.mxu0
        %v2254 = vadd.f32 %v1738, %v2245
        %v2255 = vadd.f32 %v1739, %v2251
        %vm2256 = vcmask 523264
        %2257 = vst.msk [vmem:[%s194] sm:$0xff] %vm2256, %v2254
        %2258 = vst.msk [vmem:[%s194 + $0x8] sm:$0xff] %vm2256, %v2255
        %s2259 = sand.u32 %s91, 1
        %s2260 = scalar_lea.sflag [#allocation4], %s2259
        %s2261 = sand.u32 %s91, 1
        %s2262 = smul.addr %s2261, 16
        %s2263 = scalar_lea.vmem [#allocation7], %s2262
        // Predicated region
        $region37: #{tpu_custom_call.1} parent=27 // pred_check
          %p2264 = pneg %p101
        $region38: #{tpu_custom_call.1} parent=27 // pred_check_branch
          %2266 = sbr.rel (%p2264) target = $region40
        $region39: #{tpu_custom_call.1} parent=27 // pred_region
          %s2267 = smul.u32 2, %s25
          %s2269 = ssub.s32 256, 256
          %2270 = vsyncadd %s2260, %s2269
          %s2271 = smul.addr %s24, 2
          %s2272 = sadd.s32 %s2267, %s2271
          %s2273 = smul.addr %s2272, 128
          %s2274 = scalar_lea.hbm %s2, %s2273
          %s2275 = sshll.u32 %s2263, 4
          %s2276 = int_to_ptr.vmem [resolvable:$true] %s2275
          %2281 = dma.vmem_to_hbm [thread:$0]  %s2276, 256, %s2274, %s2260, 128, 128, 8
        $region40: #{tpu_custom_call.1} parent=27 // pred_fallthru
          _
      $region28: #{tpu_custom_call.1} parent=5 // pred_fallthru
        _
      %p2282 = scmp.le.s32.totalorder 2, %s15
      // Predicated region
      $region41: #{tpu_custom_call.1} parent=5 // pred_check
        %p2283 = pneg %p2282
      $region42: #{tpu_custom_call.1} parent=5 // pred_check_branch
        %2285 = sbr.rel (%p2283) target = $region44
      $region43: #{tpu_custom_call.1} parent=5 // pred_region
        %s2286 = ssub.s32 %s15, 2
        // Predicated region
        $region45: #{tpu_custom_call.1} parent=43 // pred_check
          %p2287 = pneg %p107
        $region46: #{tpu_custom_call.1} parent=43 // pred_check_branch
          %2289 = sbr.rel (%p2287) target = $region48
        $region47: #{tpu_custom_call.1} parent=43 // pred_region
          %s2290 = sand.u32 %s92, 1
          %s2291 = scalar_lea.sflag [#allocation4], %s2290
          %s2292 = sand.u32 %s92, 1
          %s2293 = smul.addr %s2292, 16
          %s2294 = scalar_lea.vmem [#allocation7], %s2293
          %2295 = dma.done %s2291, 256
        $region48: #{tpu_custom_call.1} parent=43 // pred_fallthru
          _
      $region44: #{tpu_custom_call.1} parent=5 // pred_fallthru
        _
    $region6: #{tpu_custom_call.1} parent=1 // loop_footer
      %s19 = sadd.s32 1, %s15
    $region7: #{tpu_custom_call.1} parent=1 // loop_footer_branch
      %14 = sbr.rel target = $region3
    $region8: #{tpu_custom_call.1} parent=1 // loop_exit
      _
    %2296 = vsyncpa [#allocation3], 1
    %s2297 = scalar_lea.sflag [#allocation3], 1
    %2298 = vsyncpa %s2297, 1
    %2299 = vsyncpa [#allocation6], 1
    %2300 = vsyncpa [#allocation4], 1
    %s2301 = scalar_lea.sflag [#allocation4], 1
    %2302 = vsyncpa %s2301, 1

</llo_original>
